<compile_context>
chip_gen: v5e
topology: v5e:2x2
jax: 0.10.0
libtpu: 0.0.40
codegen_flags: <defaults>
</compile_context>

<pallas_src>
import functools

import jax
import jax.numpy as jnp
from jax import lax
from jax.experimental import pallas as pl
from jax.experimental.pallas import tpu as pltpu


def _mha_kernel(q_ref, k_ref, v_ref, mask_ref,
                wq_ref, bq_ref, wk_ref, bk_ref, wv_ref, bv_ref,
                wo_ref, bo_ref,
                out_ref, prob_ref,
                k_all, v_all, ctx_all,
                *, n_head, d_head, scale, compute_dtype):
    qt = pl.program_id(1)
    cd = compute_dtype
    H, Dh = n_head, d_head

    # ---- once per batch: fused K/V projections across ALL heads (kept in
    #      VMEM scratch, reused by every query tile of this batch) ----
    @pl.when(qt == 0)
    def _():
        k_all[...] = (jnp.dot(k_ref[0], wk_ref[...],
                              preferred_element_type=jnp.float32)
                      + bk_ref[...]).astype(cd)                      # (S, H*Dh)
        v_all[...] = (jnp.dot(v_ref[0], wv_ref[...],
                              preferred_element_type=jnp.float32)
                      + bv_ref[...]).astype(cd)                      # (S, H*Dh)

    # ---- per query tile: fused Q projection across all heads ----
    q_all = (jnp.dot(q_ref[0], wq_ref[...],
                     preferred_element_type=jnp.float32)
             + bq_ref[...]).astype(cd)                               # (Tq, H*Dh)

    kk = k_all[...]
    vv = v_all[...]
    masked = mask_ref[0] != 0                                        # (Tq, S) bool

    # ---- heads: static unrolled loop (H is compile-time) -> static lane slices
    for h in range(H):
        sl = slice(h * Dh, (h + 1) * Dh)
        q_h = q_all[:, sl]                                           # (Tq, Dh)
        k_h = kk[:, sl]                                              # (S, Dh)
        v_h = vv[:, sl]                                              # (S, Dh)

        # scores = (q_h @ k_h^T) * scale, no in-kernel transpose (contract last dims).
        scores = lax.dot_general(
            q_h, k_h, dimension_numbers=(((1,), (1,)), ((), ())),
            preferred_element_type=jnp.float32) * scale              # (Tq, S) f32
        scores = jnp.where(masked, jnp.float32(-1e9), scores)

        # Numerically stable softmax; EXACT reciprocal (attn_prob is user-visible).
        m = jnp.max(scores, axis=-1, keepdims=True)
        e = jnp.exp(scores - m)
        denom = jnp.sum(e, axis=-1, keepdims=True)
        prob = e * pl.reciprocal(denom, approx=False)                # (Tq, S) f32

        prob_ref[0, h] = prob.astype(prob_ref.dtype)

        # Per-head context, accumulated into the fused (Tq, H*Dh) context slab.
        ctx_all[:, sl] = jnp.dot(prob.astype(cd), v_h,
                                 preferred_element_type=jnp.float32)  # (Tq, Dh)

    # ---- deferred output projection: one matmul with contraction K = H*Dh ----
    out_ref[0] = (jnp.dot(ctx_all[...].astype(cd), wo_ref[...],
                          preferred_element_type=jnp.float32)
                  + bo_ref[...])                                     # (Tq, d_hidn)


def _choose_q_tile(S, max_tile=512):
    """Pick a query tile: full S if it fits, else an aligned divisor of S."""
    if S <= max_tile:
        return S
    for align in (256, 128, 64, 32):       # >=32 keeps the int8 mask block tiling-safe
        t = (max_tile // align) * align
        while t >= align:
            if S % t == 0:
                return t
            t -= align
    return S


def _default_vmem_limit():
    """Generation-dependent VMEM cap: ~80% of physical, clamped for v5e/v6e."""
    try:
        cap = pltpu.get_tpu_info().vmem_capacity_bytes
        return int(min(cap * 0.8, 110 * 1024 * 1024))
    except Exception:
        return 32 * 1024 * 1024            # conservative fallback (v7x-safe)


def multi_head_attention(Q, K, V, attn_mask, params, *, n_head, d_head,
                         compute_dtype=jnp.bfloat16,
                         prob_dtype=jnp.bfloat16,
                         q_tile=None):
    """Pallas implementation of MultiHeadAttentionLayer.forward (eval mode).

    Q, K, V:   (B, S, d_hidn) float32
    attn_mask: (B, S, S) bool (True == masked)
    returns:   (output (B, S, d_hidn) f32, attn_prob (B, n_head, S, S) prob_dtype)
    """
    B, S, d_hidn = Q.shape
    H, Dh = n_head, d_head
    HDh = H * Dh
    scale = 1.0 / (d_head ** 0.5)

    if q_tile is None:
        q_tile = _choose_q_tile(S)
    assert S % q_tile == 0, "q_tile must divide the sequence length"
    assert q_tile == S or q_tile % 32 == 0, "partial q tiles must be 32-aligned"
    n_qt = S // q_tile

    # ---- one-time host-side layout / dtype prep (hoisted out of the kernel) ----
    # Full fused weight slabs, pre-transposed to [in, out]; no scale folded in.
    wq_all = params["wq"].T.astype(compute_dtype)        # (d_hidn, H*Dh)
    wk_all = params["wk"].T.astype(compute_dtype)
    wv_all = params["wv"].T.astype(compute_dtype)
    wo_all = params["wo"].T.astype(compute_dtype)        # (H*Dh, d_hidn)
    bq_all = params["bq"].reshape(1, HDh).astype(jnp.float32)
    bk_all = params["bk"].reshape(1, HDh).astype(jnp.float32)
    bv_all = params["bv"].reshape(1, HDh).astype(jnp.float32)
    bo = params["bo"].reshape(1, d_hidn).astype(jnp.float32)

    Qc = Q.astype(compute_dtype)
    Kc = K.astype(compute_dtype)
    Vc = V.astype(compute_dtype)
    mask_i8 = attn_mask.astype(jnp.int8)                 # 4x smaller DMA than float32

    kernel = functools.partial(_mha_kernel, n_head=H, d_head=Dh,
                               scale=scale, compute_dtype=compute_dtype)

    out_shape = (
        jax.ShapeDtypeStruct((B, S, d_hidn), jnp.float32),
        jax.ShapeDtypeStruct((B, H, S, S), prob_dtype),
    )

    grid_spec = pltpu.PrefetchScalarGridSpec(
        num_scalar_prefetch=0,
        grid=(B, n_qt),  # batch parallel, query tiles sequential (scratch reuse)
        in_specs=[
            pl.BlockSpec((1, q_tile, d_hidn), lambda b, t: (b, t, 0)),   # Q tile
            pl.BlockSpec((1, S, d_hidn),      lambda b, t: (b, 0, 0)),   # K (resident per b)
            pl.BlockSpec((1, S, d_hidn),      lambda b, t: (b, 0, 0)),   # V (resident per b)
            pl.BlockSpec((1, q_tile, S),      lambda b, t: (b, t, 0)),   # mask (int8)
            # Full weight/bias slabs, constant index maps -> DMA'd once, resident.
            pl.BlockSpec((d_hidn, HDh), lambda b, t: (0, 0)),            # W_Q
            pl.BlockSpec((1, HDh),      lambda b, t: (0, 0)),            # b_Q
            pl.BlockSpec((d_hidn, HDh), lambda b, t: (0, 0)),            # W_K
            pl.BlockSpec((1, HDh),      lambda b, t: (0, 0)),            # b_K
            pl.BlockSpec((d_hidn, HDh), lambda b, t: (0, 0)),            # W_V
            pl.BlockSpec((1, HDh),      lambda b, t: (0, 0)),            # b_V
            pl.BlockSpec((HDh, d_hidn), lambda b, t: (0, 0)),            # W_O
            pl.BlockSpec((1, d_hidn),   lambda b, t: (0, 0)),            # b_O
        ],
        out_specs=[
            pl.BlockSpec((1, q_tile, d_hidn), lambda b, t: (b, t, 0)),   # output tile
            pl.BlockSpec((1, H, q_tile, S),   lambda b, t: (b, 0, t, 0)),# all heads' prob tile
        ],
        scratch_shapes=[
            pltpu.VMEM((S, HDh), compute_dtype),      # fused K projection (per batch)
            pltpu.VMEM((S, HDh), compute_dtype),      # fused V projection (per batch)
            pltpu.VMEM((q_tile, HDh), jnp.float32),   # fused per-head context accumulator
        ],
    )

    return pl.pallas_call(
        kernel,
        out_shape=out_shape,
        grid_spec=grid_spec,
        compiler_params=pltpu.CompilerParams(
            dimension_semantics=("parallel", "arbitrary"),
            vmem_limit_bytes=_default_vmem_limit(),
        ),
    )(Qc, Kc, Vc, mask_i8,
      wq_all, bq_all, wk_all, bk_all, wv_all, bv_all, wo_all, bo)


def _reference(Q, K, V, attn_mask, params, *, n_head, d_head):
    """Pure-JAX f32 reference mirroring the PyTorch module (dropout = identity)."""
    B, S, d_hidn = Q.shape
    scale = 1.0 / (d_head ** 0.5)

    def lin(x, w, b):
        return x @ w.T + b

    q_s = lin(Q, params["wq"], params["bq"]).reshape(B, S, n_head, d_head).transpose(0, 2, 1, 3)
    k_s = lin(K, params["wk"], params["bk"]).reshape(B, S, n_head, d_head).transpose(0, 2, 1, 3)
    v_s = lin(V, params["wv"], params["bv"]).reshape(B, S, n_head, d_head).transpose(0, 2, 1, 3)

    scores = jnp.einsum("bhqd,bhkd->bhqk", q_s, k_s) * scale
    scores = jnp.where(attn_mask[:, None, :, :], -1e9, scores)
    prob = jax.nn.softmax(scores, axis=-1)
    ctx = jnp.einsum("bhqk,bhkd->bhqd", prob, v_s)
    ctx = ctx.transpose(0, 2, 1, 3).reshape(B, S, n_head * d_head)
    out = lin(ctx, params["wo"], params["bo"])
    return out, prob


def _make_params(key, d_hidn, n_head, d_head):
    keys = jax.random.split(key, 8)

    def init_linear(kw, kb, out_f, in_f):
        bound = 1.0 / (in_f ** 0.5)
        w = jax.random.uniform(kw, (out_f, in_f), jnp.float32, -bound, bound)
        b = jax.random.uniform(kb, (out_f,), jnp.float32, -bound, bound)
        return w, b

    wq, bq = init_linear(keys[0], keys[1], n_head * d_head, d_hidn)
    wk, bk = init_linear(keys[2], keys[3], n_head * d_head, d_hidn)
    wv, bv = init_linear(keys[4], keys[5], n_head * d_head, d_hidn)
    wo, bo = init_linear(keys[6], keys[7], d_hidn, n_head * d_head)
    return dict(wq=wq, bq=bq, wk=wk, bk=bk, wv=wv, bv=bv, wo=wo, bo=bo)


if __name__ == "__main__":
    d_hidn, n_head, d_head = 32, 4, 8
    key = jax.random.PRNGKey(0)
    kp, k1, k2, k3, k4, k5, k6 = jax.random.split(key, 7)
    params = _make_params(kp, d_hidn, n_head, d_head)

    # ---- Test 1: small config, single query tile, bf16 compute / bf16 prob ----
    B, S = 2, 8
    Q = jax.random.normal(k1, (B, S, d_hidn), jnp.float32)
    K = jax.random.normal(k2, (B, S, d_hidn), jnp.float32)
    V = jax.random.normal(k3, (B, S, d_hidn), jnp.float32)
    attn_mask = jnp.zeros((B, S, S), dtype=bool).at[:, :, -2:].set(True)

    ref_out, ref_prob = _reference(Q, K, V, attn_mask, params,
                                   n_head=n_head, d_head=d_head)
    out_bf16, prob_bf16 = multi_head_attention(
        Q, K, V, attn_mask, params, n_head=n_head, d_head=d_head,
        compute_dtype=jnp.bfloat16, prob_dtype=jnp.bfloat16)
    jax.block_until_ready((out_bf16, prob_bf16))
    assert jnp.allclose(out_bf16, ref_out, atol=3e-2, rtol=3e-2)
    assert jnp.allclose(prob_bf16.astype(jnp.float32), ref_prob, atol=3e-2, rtol=3e-2)

    # ---- Test 2: full-precision path (f32 compute, f32 prob) ----
    out_f32, prob_f32 = multi_head_attention(
        Q, K, V, attn_mask, params, n_head=n_head, d_head=d_head,
        compute_dtype=jnp.float32, prob_dtype=jnp.float32)
    jax.block_until_ready((out_f32, prob_f32))
    assert jnp.allclose(out_f32, ref_out, atol=1e-2, rtol=1e-2)
    assert jnp.allclose(prob_f32, ref_prob, atol=1e-2, rtol=1e-2)

    # ---- Test 3: multi-tile query axis (exercises K/V scratch reuse across tiles) ----
    B2, S2 = 2, 64
    Q2 = jax.random.normal(k4, (B2, S2, d_hidn), jnp.float32)
    K2 = jax.random.normal(k5, (B2, S2, d_hidn), jnp.float32)
    V2 = jax.random.normal(k6, (B2, S2, d_hidn), jnp.float32)
    attn_mask2 = jnp.zeros((B2, S2, S2), dtype=bool).at[:, :, -5:].set(True)

    ref_out2, ref_prob2 = _reference(Q2, K2, V2, attn_mask2, params,
                                     n_head=n_head, d_head=d_head)
    out2, prob2 = multi_head_attention(
        Q2, K2, V2, attn_mask2, params, n_head=n_head, d_head=d_head,
        compute_dtype=jnp.bfloat16, prob_dtype=jnp.bfloat16, q_tile=32)
    jax.block_until_ready((out2, prob2))
    assert jnp.allclose(out2, ref_out2, atol=3e-2, rtol=3e-2)
    assert jnp.allclose(prob2.astype(jnp.float32), ref_prob2, atol=3e-2, rtol=3e-2)

    print("KERNEL_OK")
</pallas_src>

<mosaic_0001>
module attributes {stable_mosaic.version = 11 : i64} {
  func.func @_mha_kernel(%arg0: i32, %arg1: i32, %arg2: memref<1x8x32xbf16, #tpu.memory_space<vmem>>, %arg3: memref<1x8x32xbf16, #tpu.memory_space<vmem>>, %arg4: memref<1x8x32xbf16, #tpu.memory_space<vmem>>, %arg5: memref<1x8x8xi8, #tpu.memory_space<vmem>>, %arg6: memref<32x32xbf16, #tpu.memory_space<vmem>>, %arg7: memref<1x32xf32, #tpu.memory_space<vmem>>, %arg8: memref<32x32xbf16, #tpu.memory_space<vmem>>, %arg9: memref<1x32xf32, #tpu.memory_space<vmem>>, %arg10: memref<32x32xbf16, #tpu.memory_space<vmem>>, %arg11: memref<1x32xf32, #tpu.memory_space<vmem>>, %arg12: memref<32x32xbf16, #tpu.memory_space<vmem>>, %arg13: memref<1x32xf32, #tpu.memory_space<vmem>>, %arg14: memref<1x8x32xf32, #tpu.memory_space<vmem>>, %arg15: memref<1x4x8x8xbf16, #tpu.memory_space<vmem>>, %arg16: memref<8x32xbf16, #tpu.memory_space<vmem>>, %arg17: memref<8x32xbf16, #tpu.memory_space<vmem>>, %arg18: memref<8x32xf32, #tpu.memory_space<vmem>>) attributes {dimension_semantics = [#tpu.dimension_semantics<parallel>, #tpu.dimension_semantics<arbitrary>], iteration_bounds = array<i64: 2, 1>, scalar_prefetch = 0 : i64, scratch_operands = 3 : i64, tpu.core_type = #tpu.core_type<tc>, window_params = [{transform_indices = @transform_0, window_bounds = array<i64: 1, 8, 32>}, {transform_indices = @transform_1, window_bounds = array<i64: 1, 8, 32>}, {transform_indices = @transform_2, window_bounds = array<i64: 1, 8, 32>}, {transform_indices = @transform_3, window_bounds = array<i64: 1, 8, 8>}, {pipeline_mode = #tpu.pipeline_mode<synchronous>, transform_indices = @transform_4, window_bounds = array<i64: 32, 32>}, {pipeline_mode = #tpu.pipeline_mode<synchronous>, transform_indices = @transform_5, window_bounds = array<i64: 1, 32>}, {pipeline_mode = #tpu.pipeline_mode<synchronous>, transform_indices = @transform_6, window_bounds = array<i64: 32, 32>}, {pipeline_mode = #tpu.pipeline_mode<synchronous>, transform_indices = @transform_7, window_bounds = array<i64: 1, 32>}, {pipeline_mode = #tpu.pipeline_mode<synchronous>, transform_indices = @transform_8, window_bounds = array<i64: 32, 32>}, {pipeline_mode = #tpu.pipeline_mode<synchronous>, transform_indices = @transform_9, window_bounds = array<i64: 1, 32>}, {pipeline_mode = #tpu.pipeline_mode<synchronous>, transform_indices = @transform_10, window_bounds = array<i64: 32, 32>}, {pipeline_mode = #tpu.pipeline_mode<synchronous>, transform_indices = @transform_11, window_bounds = array<i64: 1, 32>}, {transform_indices = @transform_12, window_bounds = array<i64: 1, 8, 32>}, {transform_indices = @transform_13, window_bounds = array<i64: 1, 4, 8, 8>}]} {
    %c0_i32 = arith.constant 0 : i32
    %0 = arith.cmpi eq, %arg1, %c0_i32 : i32
    %1 = arith.extui %0 : i1 to i32
    %c0_i32_0 = arith.constant 0 : i32
    %2 = arith.cmpi ne, %1, %c0_i32_0 : i32
    scf.if %2 {
      %c0_66 = arith.constant 0 : index
      %c0_67 = arith.constant 0 : index
      %c0_68 = arith.constant 0 : index
      %127 = vector.load %arg3[%c0_66, %c0_67, %c0_68] : memref<1x8x32xbf16, #tpu.memory_space<vmem>>, vector<1x8x32xbf16>
      %128 = vector.shape_cast %127 : vector<1x8x32xbf16> to vector<8x32xbf16>
      %c0_69 = arith.constant 0 : index
      %c0_70 = arith.constant 0 : index
      %129 = vector.load %arg8[%c0_69, %c0_70] : memref<32x32xbf16, #tpu.memory_space<vmem>>, vector<32x32xbf16>
      %cst_71 = arith.constant dense<0.000000e+00> : vector<8x32xf32>
      %130 = tpu.matmul %128, %129, %cst_71 {dimension_numbers = #tpu.dot_dimension_numbers<[1], [0], [0], [1], [0, 0, 1, 1], [], []>} : vector<8x32xbf16>, vector<32x32xbf16>, vector<8x32xf32> -> vector<8x32xf32>
      %c0_72 = arith.constant 0 : index
      %c0_73 = arith.constant 0 : index
      %131 = vector.load %arg9[%c0_72, %c0_73] : memref<1x32xf32, #tpu.memory_space<vmem>>, vector<1x32xf32>
      %132 = vector.broadcast %131 : vector<1x32xf32> to vector<8x32xf32>
      %133 = arith.addf %130, %132 : vector<8x32xf32>
      %134 = arith.truncf %133 : vector<8x32xf32> to vector<8x32xbf16>
      %c0_74 = arith.constant 0 : index
      %c0_75 = arith.constant 0 : index
      %135 = vector.load %arg16[%c0_74, %c0_75] : memref<8x32xbf16, #tpu.memory_space<vmem>>, vector<8x32xbf16>
      tpu.vector_store %arg16[%c0_74, %c0_75], %134 {strides = array<i32>} : memref<8x32xbf16, #tpu.memory_space<vmem>>, vector<8x32xbf16>,
      %c0_76 = arith.constant 0 : index
      %c0_77 = arith.constant 0 : index
      %c0_78 = arith.constant 0 : index
      %136 = vector.load %arg4[%c0_76, %c0_77, %c0_78] : memref<1x8x32xbf16, #tpu.memory_space<vmem>>, vector<1x8x32xbf16>
      %137 = vector.shape_cast %136 : vector<1x8x32xbf16> to vector<8x32xbf16>
      %c0_79 = arith.constant 0 : index
      %c0_80 = arith.constant 0 : index
      %138 = vector.load %arg10[%c0_79, %c0_80] : memref<32x32xbf16, #tpu.memory_space<vmem>>, vector<32x32xbf16>
      %cst_81 = arith.constant dense<0.000000e+00> : vector<8x32xf32>
      %139 = tpu.matmul %137, %138, %cst_81 {dimension_numbers = #tpu.dot_dimension_numbers<[1], [0], [0], [1], [0, 0, 1, 1], [], []>} : vector<8x32xbf16>, vector<32x32xbf16>, vector<8x32xf32> -> vector<8x32xf32>
      %c0_82 = arith.constant 0 : index
      %c0_83 = arith.constant 0 : index
      %140 = vector.load %arg11[%c0_82, %c0_83] : memref<1x32xf32, #tpu.memory_space<vmem>>, vector<1x32xf32>
      %141 = vector.broadcast %140 : vector<1x32xf32> to vector<8x32xf32>
      %142 = arith.addf %139, %141 : vector<8x32xf32>
      %143 = arith.truncf %142 : vector<8x32xf32> to vector<8x32xbf16>
      %c0_84 = arith.constant 0 : index
      %c0_85 = arith.constant 0 : index
      %144 = vector.load %arg17[%c0_84, %c0_85] : memref<8x32xbf16, #tpu.memory_space<vmem>>, vector<8x32xbf16>
      tpu.vector_store %arg17[%c0_84, %c0_85], %143 {strides = array<i32>} : memref<8x32xbf16, #tpu.memory_space<vmem>>, vector<8x32xbf16>,
    } else {
    }
    %c0 = arith.constant 0 : index
    %c0_1 = arith.constant 0 : index
    %c0_2 = arith.constant 0 : index
    %3 = vector.load %arg2[%c0, %c0_1, %c0_2] : memref<1x8x32xbf16, #tpu.memory_space<vmem>>, vector<1x8x32xbf16>
    %4 = vector.shape_cast %3 : vector<1x8x32xbf16> to vector<8x32xbf16>
    %c0_3 = arith.constant 0 : index
    %c0_4 = arith.constant 0 : index
    %5 = vector.load %arg6[%c0_3, %c0_4] : memref<32x32xbf16, #tpu.memory_space<vmem>>, vector<32x32xbf16>
    %cst = arith.constant dense<0.000000e+00> : vector<8x32xf32>
    %6 = tpu.matmul %4, %5, %cst {dimension_numbers = #tpu.dot_dimension_numbers<[1], [0], [0], [1], [0, 0, 1, 1], [], []>} : vector<8x32xbf16>, vector<32x32xbf16>, vector<8x32xf32> -> vector<8x32xf32>
    %c0_5 = arith.constant 0 : index
    %c0_6 = arith.constant 0 : index
    %7 = vector.load %arg7[%c0_5, %c0_6] : memref<1x32xf32, #tpu.memory_space<vmem>>, vector<1x32xf32>
    %8 = vector.broadcast %7 : vector<1x32xf32> to vector<8x32xf32>
    %9 = arith.addf %6, %8 : vector<8x32xf32>
    %10 = arith.truncf %9 : vector<8x32xf32> to vector<8x32xbf16>
    %c0_7 = arith.constant 0 : index
    %c0_8 = arith.constant 0 : index
    %11 = vector.load %arg16[%c0_7, %c0_8] : memref<8x32xbf16, #tpu.memory_space<vmem>>, vector<8x32xbf16>
    %c0_9 = arith.constant 0 : index
    %c0_10 = arith.constant 0 : index
    %12 = vector.load %arg17[%c0_9, %c0_10] : memref<8x32xbf16, #tpu.memory_space<vmem>>, vector<8x32xbf16>
    %c0_11 = arith.constant 0 : index
    %c0_12 = arith.constant 0 : index
    %c0_13 = arith.constant 0 : index
    %13 = vector.load %arg5[%c0_11, %c0_12, %c0_13] : memref<1x8x8xi8, #tpu.memory_space<vmem>>, vector<1x8x8xi8>
    %14 = vector.shape_cast %13 : vector<1x8x8xi8> to vector<8x8xi8>
    %c0_i8 = arith.constant 0 : i8
    %15 = vector.broadcast %c0_i8 : i8 to vector<8x8xi8>
    %16 = arith.cmpi ne, %14, %15 : vector<8x8xi8>
    %17 = vector.extract_strided_slice %10 {offsets = [0, 0], sizes = [8, 8], strides = [1, 1]} : vector<8x32xbf16> to vector<8x8xbf16>
    %18 = vector.extract_strided_slice %11 {offsets = [0, 0], sizes = [8, 8], strides = [1, 1]} : vector<8x32xbf16> to vector<8x8xbf16>
    %19 = vector.extract_strided_slice %12 {offsets = [0, 0], sizes = [8, 8], strides = [1, 1]} : vector<8x32xbf16> to vector<8x8xbf16>
    %cst_14 = arith.constant dense<0.000000e+00> : vector<8x8xf32>
    %20 = tpu.matmul %17, %18, %cst_14 {dimension_numbers = #tpu.dot_dimension_numbers<[1], [1], [0], [0], [0, 0, 1, 0], [], []>} : vector<8x8xbf16>, vector<8x8xbf16>, vector<8x8xf32> -> vector<8x8xf32>
    %cst_15 = arith.constant 0.353553385 : f32
    %21 = vector.broadcast %cst_15 : f32 to vector<8x8xf32>
    %22 = arith.mulf %20, %21 : vector<8x8xf32>
    %cst_16 = arith.constant -1.000000e+09 : f32
    %23 = vector.broadcast %cst_16 : f32 to vector<8x8xf32>
    %24 = arith.select %16, %23, %22 : vector<8x8xi1>, vector<8x8xf32>
    %cst_17 = arith.constant dense<0xFF800000> : vector<8xf32>
    %25 = vector.multi_reduction <maximumf>, %24, %cst_17 [1] : vector<8x8xf32> to vector<8xf32>
    %26 = vector.shape_cast %25 : vector<8xf32> to vector<8x1xf32>
    %27 = vector.broadcast %26 : vector<8x1xf32> to vector<8x8xf32>
    %28 = arith.subf %24, %27 : vector<8x8xf32>
    %29 = math.exp %28 : vector<8x8xf32>
    %cst_18 = arith.constant dense<0.000000e+00> : vector<8xf32>
    %30 = vector.multi_reduction <add>, %29, %cst_18 [1] : vector<8x8xf32> to vector<8xf32>
    %31 = vector.shape_cast %30 : vector<8xf32> to vector<8x1xf32>
    %32 = tpu.reciprocal %31 : vector<8x1xf32> -> vector<8x1xf32>
    %33 = vector.broadcast %32 : vector<8x1xf32> to vector<8x8xf32>
    %34 = arith.mulf %29, %33 : vector<8x8xf32>
    %35 = arith.truncf %34 : vector<8x8xf32> to vector<8x8xbf16>
    %c0_19 = arith.constant 0 : index
    %c0_20 = arith.constant 0 : index
    %c0_21 = arith.constant 0 : index
    %c0_22 = arith.constant 0 : index
    %36 = vector.load %arg15[%c0_19, %c0_20, %c0_21, %c0_22] : memref<1x4x8x8xbf16, #tpu.memory_space<vmem>>, vector<1x1x8x8xbf16>
    %37 = vector.shape_cast %36 : vector<1x1x8x8xbf16> to vector<8x8xbf16>
    %38 = vector.shape_cast %35 : vector<8x8xbf16> to vector<1x1x8x8xbf16>
    tpu.vector_store %arg15[%c0_19, %c0_20, %c0_21, %c0_22], %38 {strides = array<i32>} : memref<1x4x8x8xbf16, #tpu.memory_space<vmem>>, vector<1x1x8x8xbf16>,
    %39 = arith.truncf %34 : vector<8x8xf32> to vector<8x8xbf16>
    %cst_23 = arith.constant dense<0.000000e+00> : vector<8x8xf32>
    %40 = tpu.matmul %39, %19, %cst_23 {dimension_numbers = #tpu.dot_dimension_numbers<[1], [0], [0], [1], [0, 0, 1, 1], [], []>} : vector<8x8xbf16>, vector<8x8xbf16>, vector<8x8xf32> -> vector<8x8xf32>
    %c0_24 = arith.constant 0 : index
    %c0_25 = arith.constant 0 : index
    %41 = vector.load %arg18[%c0_24, %c0_25] : memref<8x32xf32, #tpu.memory_space<vmem>>, vector<8x8xf32>
    tpu.vector_store %arg18[%c0_24, %c0_25], %40 {strides = array<i32>} : memref<8x32xf32, #tpu.memory_space<vmem>>, vector<8x8xf32>,
    %42 = vector.extract_strided_slice %10 {offsets = [0, 8], sizes = [8, 8], strides = [1, 1]} : vector<8x32xbf16> to vector<8x8xbf16>
    %43 = vector.extract_strided_slice %11 {offsets = [0, 8], sizes = [8, 8], strides = [1, 1]} : vector<8x32xbf16> to vector<8x8xbf16>
    %44 = vector.extract_strided_slice %12 {offsets = [0, 8], sizes = [8, 8], strides = [1, 1]} : vector<8x32xbf16> to vector<8x8xbf16>
    %cst_26 = arith.constant dense<0.000000e+00> : vector<8x8xf32>
    %45 = tpu.matmul %42, %43, %cst_26 {dimension_numbers = #tpu.dot_dimension_numbers<[1], [1], [0], [0], [0, 0, 1, 0], [], []>} : vector<8x8xbf16>, vector<8x8xbf16>, vector<8x8xf32> -> vector<8x8xf32>
    %cst_27 = arith.constant 0.353553385 : f32
    %46 = vector.broadcast %cst_27 : f32 to vector<8x8xf32>
    %47 = arith.mulf %45, %46 : vector<8x8xf32>
    %cst_28 = arith.constant -1.000000e+09 : f32
    %48 = vector.broadcast %cst_28 : f32 to vector<8x8xf32>
    %49 = arith.select %16, %48, %47 : vector<8x8xi1>, vector<8x8xf32>
    %cst_29 = arith.constant dense<0xFF800000> : vector<8xf32>
    %50 = vector.multi_reduction <maximumf>, %49, %cst_29 [1] : vector<8x8xf32> to vector<8xf32>
    %51 = vector.shape_cast %50 : vector<8xf32> to vector<8x1xf32>
    %52 = vector.broadcast %51 : vector<8x1xf32> to vector<8x8xf32>
    %53 = arith.subf %49, %52 : vector<8x8xf32>
    %54 = math.exp %53 : vector<8x8xf32>
    %cst_30 = arith.constant dense<0.000000e+00> : vector<8xf32>
    %55 = vector.multi_reduction <add>, %54, %cst_30 [1] : vector<8x8xf32> to vector<8xf32>
    %56 = vector.shape_cast %55 : vector<8xf32> to vector<8x1xf32>
    %57 = tpu.reciprocal %56 : vector<8x1xf32> -> vector<8x1xf32>
    %58 = vector.broadcast %57 : vector<8x1xf32> to vector<8x8xf32>
    %59 = arith.mulf %54, %58 : vector<8x8xf32>
    %60 = arith.truncf %59 : vector<8x8xf32> to vector<8x8xbf16>
    %c0_31 = arith.constant 0 : index
    %c1 = arith.constant 1 : index
    %c0_32 = arith.constant 0 : index
    %c0_33 = arith.constant 0 : index
    %61 = vector.load %arg15[%c0_31, %c1, %c0_32, %c0_33] : memref<1x4x8x8xbf16, #tpu.memory_space<vmem>>, vector<1x1x8x8xbf16>
    %62 = vector.shape_cast %61 : vector<1x1x8x8xbf16> to vector<8x8xbf16>
    %63 = vector.shape_cast %60 : vector<8x8xbf16> to vector<1x1x8x8xbf16>
    tpu.vector_store %arg15[%c0_31, %c1, %c0_32, %c0_33], %63 {strides = array<i32>} : memref<1x4x8x8xbf16, #tpu.memory_space<vmem>>, vector<1x1x8x8xbf16>,
    %64 = arith.truncf %59 : vector<8x8xf32> to vector<8x8xbf16>
    %cst_34 = arith.constant dense<0.000000e+00> : vector<8x8xf32>
    %65 = tpu.matmul %64, %44, %cst_34 {dimension_numbers = #tpu.dot_dimension_numbers<[1], [0], [0], [1], [0, 0, 1, 1], [], []>} : vector<8x8xbf16>, vector<8x8xbf16>, vector<8x8xf32> -> vector<8x8xf32>
    %c0_35 = arith.constant 0 : index
    %c8 = arith.constant 8 : index
    %66 = vector.load %arg18[%c0_35, %c8] : memref<8x32xf32, #tpu.memory_space<vmem>>, vector<8x8xf32>
    tpu.vector_store %arg18[%c0_35, %c8], %65 {strides = array<i32>} : memref<8x32xf32, #tpu.memory_space<vmem>>, vector<8x8xf32>,
    %67 = vector.extract_strided_slice %10 {offsets = [0, 16], sizes = [8, 8], strides = [1, 1]} : vector<8x32xbf16> to vector<8x8xbf16>
    %68 = vector.extract_strided_slice %11 {offsets = [0, 16], sizes = [8, 8], strides = [1, 1]} : vector<8x32xbf16> to vector<8x8xbf16>
    %69 = vector.extract_strided_slice %12 {offsets = [0, 16], sizes = [8, 8], strides = [1, 1]} : vector<8x32xbf16> to vector<8x8xbf16>
    %cst_36 = arith.constant dense<0.000000e+00> : vector<8x8xf32>
    %70 = tpu.matmul %67, %68, %cst_36 {dimension_numbers = #tpu.dot_dimension_numbers<[1], [1], [0], [0], [0, 0, 1, 0], [], []>} : vector<8x8xbf16>, vector<8x8xbf16>, vector<8x8xf32> -> vector<8x8xf32>
    %cst_37 = arith.constant 0.353553385 : f32
    %71 = vector.broadcast %cst_37 : f32 to vector<8x8xf32>
    %72 = arith.mulf %70, %71 : vector<8x8xf32>
    %cst_38 = arith.constant -1.000000e+09 : f32
    %73 = vector.broadcast %cst_38 : f32 to vector<8x8xf32>
    %74 = arith.select %16, %73, %72 : vector<8x8xi1>, vector<8x8xf32>
    %cst_39 = arith.constant dense<0xFF800000> : vector<8xf32>
    %75 = vector.multi_reduction <maximumf>, %74, %cst_39 [1] : vector<8x8xf32> to vector<8xf32>
    %76 = vector.shape_cast %75 : vector<8xf32> to vector<8x1xf32>
    %77 = vector.broadcast %76 : vector<8x1xf32> to vector<8x8xf32>
    %78 = arith.subf %74, %77 : vector<8x8xf32>
    %79 = math.exp %78 : vector<8x8xf32>
    %cst_40 = arith.constant dense<0.000000e+00> : vector<8xf32>
    %80 = vector.multi_reduction <add>, %79, %cst_40 [1] : vector<8x8xf32> to vector<8xf32>
    %81 = vector.shape_cast %80 : vector<8xf32> to vector<8x1xf32>
    %82 = tpu.reciprocal %81 : vector<8x1xf32> -> vector<8x1xf32>
    %83 = vector.broadcast %82 : vector<8x1xf32> to vector<8x8xf32>
    %84 = arith.mulf %79, %83 : vector<8x8xf32>
    %85 = arith.truncf %84 : vector<8x8xf32> to vector<8x8xbf16>
    %c0_41 = arith.constant 0 : index
    %c2 = arith.constant 2 : index
    %c0_42 = arith.constant 0 : index
    %c0_43 = arith.constant 0 : index
    %86 = vector.load %arg15[%c0_41, %c2, %c0_42, %c0_43] : memref<1x4x8x8xbf16, #tpu.memory_space<vmem>>, vector<1x1x8x8xbf16>
    %87 = vector.shape_cast %86 : vector<1x1x8x8xbf16> to vector<8x8xbf16>
    %88 = vector.shape_cast %85 : vector<8x8xbf16> to vector<1x1x8x8xbf16>
    tpu.vector_store %arg15[%c0_41, %c2, %c0_42, %c0_43], %88 {strides = array<i32>} : memref<1x4x8x8xbf16, #tpu.memory_space<vmem>>, vector<1x1x8x8xbf16>,
    %89 = arith.truncf %84 : vector<8x8xf32> to vector<8x8xbf16>
    %cst_44 = arith.constant dense<0.000000e+00> : vector<8x8xf32>
    %90 = tpu.matmul %89, %69, %cst_44 {dimension_numbers = #tpu.dot_dimension_numbers<[1], [0], [0], [1], [0, 0, 1, 1], [], []>} : vector<8x8xbf16>, vector<8x8xbf16>, vector<8x8xf32> -> vector<8x8xf32>
    %c0_45 = arith.constant 0 : index
    %c16 = arith.constant 16 : index
    %91 = vector.load %arg18[%c0_45, %c16] : memref<8x32xf32, #tpu.memory_space<vmem>>, vector<8x8xf32>
    tpu.vector_store %arg18[%c0_45, %c16], %90 {strides = array<i32>} : memref<8x32xf32, #tpu.memory_space<vmem>>, vector<8x8xf32>,
    %92 = vector.extract_strided_slice %10 {offsets = [0, 24], sizes = [8, 8], strides = [1, 1]} : vector<8x32xbf16> to vector<8x8xbf16>
    %93 = vector.extract_strided_slice %11 {offsets = [0, 24], sizes = [8, 8], strides = [1, 1]} : vector<8x32xbf16> to vector<8x8xbf16>
    %94 = vector.extract_strided_slice %12 {offsets = [0, 24], sizes = [8, 8], strides = [1, 1]} : vector<8x32xbf16> to vector<8x8xbf16>
    %cst_46 = arith.constant dense<0.000000e+00> : vector<8x8xf32>
    %95 = tpu.matmul %92, %93, %cst_46 {dimension_numbers = #tpu.dot_dimension_numbers<[1], [1], [0], [0], [0, 0, 1, 0], [], []>} : vector<8x8xbf16>, vector<8x8xbf16>, vector<8x8xf32> -> vector<8x8xf32>
    %cst_47 = arith.constant 0.353553385 : f32
    %96 = vector.broadcast %cst_47 : f32 to vector<8x8xf32>
    %97 = arith.mulf %95, %96 : vector<8x8xf32>
    %cst_48 = arith.constant -1.000000e+09 : f32
    %98 = vector.broadcast %cst_48 : f32 to vector<8x8xf32>
    %99 = arith.select %16, %98, %97 : vector<8x8xi1>, vector<8x8xf32>
    %cst_49 = arith.constant dense<0xFF800000> : vector<8xf32>
    %100 = vector.multi_reduction <maximumf>, %99, %cst_49 [1] : vector<8x8xf32> to vector<8xf32>
    %101 = vector.shape_cast %100 : vector<8xf32> to vector<8x1xf32>
    %102 = vector.broadcast %101 : vector<8x1xf32> to vector<8x8xf32>
    %103 = arith.subf %99, %102 : vector<8x8xf32>
    %104 = math.exp %103 : vector<8x8xf32>
    %cst_50 = arith.constant dense<0.000000e+00> : vector<8xf32>
    %105 = vector.multi_reduction <add>, %104, %cst_50 [1] : vector<8x8xf32> to vector<8xf32>
    %106 = vector.shape_cast %105 : vector<8xf32> to vector<8x1xf32>
    %107 = tpu.reciprocal %106 : vector<8x1xf32> -> vector<8x1xf32>
    %108 = vector.broadcast %107 : vector<8x1xf32> to vector<8x8xf32>
    %109 = arith.mulf %104, %108 : vector<8x8xf32>
    %110 = arith.truncf %109 : vector<8x8xf32> to vector<8x8xbf16>
    %c0_51 = arith.constant 0 : index
    %c3 = arith.constant 3 : index
    %c0_52 = arith.constant 0 : index
    %c0_53 = arith.constant 0 : index
    %111 = vector.load %arg15[%c0_51, %c3, %c0_52, %c0_53] : memref<1x4x8x8xbf16, #tpu.memory_space<vmem>>, vector<1x1x8x8xbf16>
    %112 = vector.shape_cast %111 : vector<1x1x8x8xbf16> to vector<8x8xbf16>
    %113 = vector.shape_cast %110 : vector<8x8xbf16> to vector<1x1x8x8xbf16>
    tpu.vector_store %arg15[%c0_51, %c3, %c0_52, %c0_53], %113 {strides = array<i32>} : memref<1x4x8x8xbf16, #tpu.memory_space<vmem>>, vector<1x1x8x8xbf16>,
    %114 = arith.truncf %109 : vector<8x8xf32> to vector<8x8xbf16>
    %cst_54 = arith.constant dense<0.000000e+00> : vector<8x8xf32>
    %115 = tpu.matmul %114, %94, %cst_54 {dimension_numbers = #tpu.dot_dimension_numbers<[1], [0], [0], [1], [0, 0, 1, 1], [], []>} : vector<8x8xbf16>, vector<8x8xbf16>, vector<8x8xf32> -> vector<8x8xf32>
    %c0_55 = arith.constant 0 : index
    %c24 = arith.constant 24 : index
    %116 = vector.load %arg18[%c0_55, %c24] : memref<8x32xf32, #tpu.memory_space<vmem>>, vector<8x8xf32>
    tpu.vector_store %arg18[%c0_55, %c24], %115 {strides = array<i32>} : memref<8x32xf32, #tpu.memory_space<vmem>>, vector<8x8xf32>,
    %c0_56 = arith.constant 0 : index
    %c0_57 = arith.constant 0 : index
    %117 = vector.load %arg18[%c0_56, %c0_57] : memref<8x32xf32, #tpu.memory_space<vmem>>, vector<8x32xf32>
    %118 = arith.truncf %117 : vector<8x32xf32> to vector<8x32xbf16>
    %c0_58 = arith.constant 0 : index
    %c0_59 = arith.constant 0 : index
    %119 = vector.load %arg12[%c0_58, %c0_59] : memref<32x32xbf16, #tpu.memory_space<vmem>>, vector<32x32xbf16>
    %cst_60 = arith.constant dense<0.000000e+00> : vector<8x32xf32>
    %120 = tpu.matmul %118, %119, %cst_60 {dimension_numbers = #tpu.dot_dimension_numbers<[1], [0], [0], [1], [0, 0, 1, 1], [], []>} : vector<8x32xbf16>, vector<32x32xbf16>, vector<8x32xf32> -> vector<8x32xf32>
    %c0_61 = arith.constant 0 : index
    %c0_62 = arith.constant 0 : index
    %121 = vector.load %arg13[%c0_61, %c0_62] : memref<1x32xf32, #tpu.memory_space<vmem>>, vector<1x32xf32>
    %122 = vector.broadcast %121 : vector<1x32xf32> to vector<8x32xf32>
    %123 = arith.addf %120, %122 : vector<8x32xf32>
    %c0_63 = arith.constant 0 : index
    %c0_64 = arith.constant 0 : index
    %c0_65 = arith.constant 0 : index
    %124 = vector.load %arg14[%c0_63, %c0_64, %c0_65] : memref<1x8x32xf32, #tpu.memory_space<vmem>>, vector<1x8x32xf32>
    %125 = vector.shape_cast %124 : vector<1x8x32xf32> to vector<8x32xf32>
    %126 = vector.shape_cast %123 : vector<8x32xf32> to vector<1x8x32xf32>
    tpu.vector_store %arg14[%c0_63, %c0_64, %c0_65], %126 {strides = array<i32>} : memref<1x8x32xf32, #tpu.memory_space<vmem>>, vector<1x8x32xf32>,
    return
  }
  func.func @transform_0(%arg0: i32, %arg1: i32) -> (i32, i32, i32) {
    %c0_i32 = arith.constant 0 : i32
    %c0_i32_0 = arith.constant 0 : i32
    return %arg0, %arg1, %c0_i32 : i32, i32, i32
  }
  func.func @transform_1(%arg0: i32, %arg1: i32) -> (i32, i32, i32) {
    %c0_i32 = arith.constant 0 : i32
    %c0_i32_0 = arith.constant 0 : i32
    %c0_i32_1 = arith.constant 0 : i32
    return %arg0, %c0_i32, %c0_i32_0 : i32, i32, i32
  }
  func.func @transform_2(%arg0: i32, %arg1: i32) -> (i32, i32, i32) {
    %c0_i32 = arith.constant 0 : i32
    %c0_i32_0 = arith.constant 0 : i32
    %c0_i32_1 = arith.constant 0 : i32
    return %arg0, %c0_i32, %c0_i32_0 : i32, i32, i32
  }
  func.func @transform_3(%arg0: i32, %arg1: i32) -> (i32, i32, i32) {
    %c0_i32 = arith.constant 0 : i32
    %c0_i32_0 = arith.constant 0 : i32
    return %arg0, %arg1, %c0_i32 : i32, i32, i32
  }
  func.func @transform_4(%arg0: i32, %arg1: i32) -> (i32, i32) {
    %c0_i32 = arith.constant 0 : i32
    %c0_i32_0 = arith.constant 0 : i32
    %c0_i32_1 = arith.constant 0 : i32
    return %c0_i32, %c0_i32_0 : i32, i32
  }
  func.func @transform_5(%arg0: i32, %arg1: i32) -> (i32, i32) {
    %c0_i32 = arith.constant 0 : i32
    %c0_i32_0 = arith.constant 0 : i32
    %c0_i32_1 = arith.constant 0 : i32
    return %c0_i32, %c0_i32_0 : i32, i32
  }
  func.func @transform_6(%arg0: i32, %arg1: i32) -> (i32, i32) {
    %c0_i32 = arith.constant 0 : i32
    %c0_i32_0 = arith.constant 0 : i32
    %c0_i32_1 = arith.constant 0 : i32
    return %c0_i32, %c0_i32_0 : i32, i32
  }
  func.func @transform_7(%arg0: i32, %arg1: i32) -> (i32, i32) {
    %c0_i32 = arith.constant 0 : i32
    %c0_i32_0 = arith.constant 0 : i32
    %c0_i32_1 = arith.constant 0 : i32
    return %c0_i32, %c0_i32_0 : i32, i32
  }
  func.func @transform_8(%arg0: i32, %arg1: i32) -> (i32, i32) {
    %c0_i32 = arith.constant 0 : i32
    %c0_i32_0 = arith.constant 0 : i32
    %c0_i32_1 = arith.constant 0 : i32
    return %c0_i32, %c0_i32_0 : i32, i32
  }
  func.func @transform_9(%arg0: i32, %arg1: i32) -> (i32, i32) {
    %c0_i32 = arith.constant 0 : i32
    %c0_i32_0 = arith.constant 0 : i32
    %c0_i32_1 = arith.constant 0 : i32
    return %c0_i32, %c0_i32_0 : i32, i32
  }
  func.func @transform_10(%arg0: i32, %arg1: i32) -> (i32, i32) {
    %c0_i32 = arith.constant 0 : i32
    %c0_i32_0 = arith.constant 0 : i32
    %c0_i32_1 = arith.constant 0 : i32
    return %c0_i32, %c0_i32_0 : i32, i32
  }
  func.func @transform_11(%arg0: i32, %arg1: i32) -> (i32, i32) {
    %c0_i32 = arith.constant 0 : i32
    %c0_i32_0 = arith.constant 0 : i32
    %c0_i32_1 = arith.constant 0 : i32
    return %c0_i32, %c0_i32_0 : i32, i32
  }
  func.func @transform_12(%arg0: i32, %arg1: i32) -> (i32, i32, i32) {
    %c0_i32 = arith.constant 0 : i32
    %c0_i32_0 = arith.constant 0 : i32
    return %arg0, %arg1, %c0_i32 : i32, i32, i32
  }
  func.func @transform_13(%arg0: i32, %arg1: i32) -> (i32, i32, i32, i32) {
    %c0_i32 = arith.constant 0 : i32
    %c0_i32_0 = arith.constant 0 : i32
    %c0_i32_1 = arith.constant 0 : i32
    return %arg0, %c0_i32, %arg1, %c0_i32_0 : i32, i32, i32, i32
  }
}

</mosaic_0001>

<llo_original>
// kernel: tpu_custom_call.1
$region0: #{tpu_custom_call.1}
  #allocation0 [shape = 'u32[]', space=smem, size = 0x4, offset = 0x4, fixed_abs, tag = 'smem constant byte address 0x4 - core index']
  #allocation1 [shape = 'u32[72,128]{1,0:T(1,128)}', space=vmem, size = 0x9000, scoped, tag = 'internal scratch']
  #allocation2 [shape = 'bf16[8,32]{1,0:T(8,128)(2,1)}', space=vmem, size = 0x800, scoped, tag = 'scratch operand']
  #allocation3 [shape = 'bf16[8,32]{1,0:T(8,128)(2,1)}', space=vmem, size = 0x800, scoped, tag = 'scratch operand']
  #allocation4 [shape = 'f32[8,32]{1,0:T(8,128)}', space=vmem, size = 0x1000, scoped, tag = 'scratch operand']
  %s0 = inlined_call_operand.hbm [shape: bf16[2,8,32], index: 0, kind: input, shape index: {}]
  %s1 = inlined_call_operand.hbm [shape: bf16[2,8,32], index: 1, kind: input, shape index: {}]
  %s2 = inlined_call_operand.hbm [shape: bf16[2,8,32], index: 2, kind: input, shape index: {}]
  %s3 = inlined_call_operand.hbm [shape: s8[2,8,8], index: 3, kind: input, shape index: {}]
  %s4 = inlined_call_operand.hbm [shape: bf16[32,32], index: 4, kind: input, shape index: {}]
  %s5 = inlined_call_operand.vmem [shape: f32[1,32], index: 5, kind: input, shape index: {}]
  %s6 = inlined_call_operand.hbm [shape: bf16[32,32], index: 6, kind: input, shape index: {}]
  %s7 = inlined_call_operand.vmem [shape: f32[1,32], index: 7, kind: input, shape index: {}]
  %s8 = inlined_call_operand.hbm [shape: bf16[32,32], index: 8, kind: input, shape index: {}]
  %s9 = inlined_call_operand.vmem [shape: f32[1,32], index: 9, kind: input, shape index: {}]
  %s10 = inlined_call_operand.hbm [shape: bf16[32,32], index: 10, kind: input, shape index: {}]
  %s11 = inlined_call_operand.vmem [shape: f32[1,32], index: 11, kind: input, shape index: {}]
  %s12 = inlined_call_operand.hbm [shape: f32[2,8,32], index: 12, kind: output, shape index: {0}]
  %s13 = inlined_call_operand.hbm [shape: bf16[2,4,8,8], index: 13, kind: output, shape index: {1}]
  %14 = xla_tuple %s12, %s13
  %s15 = sld [smem:[#allocation0]]
  $region125: #{tpu_custom_call.1} parent=0
    _
  %s17 = ssub.s32 1, %s15
  %s18 = scalar_select 0, %s17, %s15
  $region1: #{tpu_custom_call.1} parent=0
    #allocation5 [shape = 'u8[4096]{0}', space=vmem, size = 0x1000, scoped, tag = 'input window, operand 0']
    #allocation6 [shape = 's32[2]{0}', space=sflag, size = 0x8, scoped, tag = 'scoped memory for tpu_custom_call.1']
    #allocation7 [shape = 's32[2]{0}', space=sflag, size = 0x8, scoped, tag = 'scoped memory for tpu_custom_call.1']
    #allocation8 [shape = 'u8[4096]{0}', space=vmem, size = 0x1000, scoped, tag = 'input window, operand 1']
    #allocation9 [shape = 's32[2]{0}', space=sflag, size = 0x8, scoped, tag = 'scoped memory for tpu_custom_call.1']
    #allocation10 [shape = 'u8[4096]{0}', space=vmem, size = 0x1000, scoped, tag = 'input window, operand 2']
    #allocation11 [shape = 'u8[2048]{0}', space=vmem, size = 0x800, scoped, tag = 'input window, operand 3']
    #allocation12 [shape = 's32[2]{0}', space=sflag, size = 0x8, scoped, tag = 'scoped memory for tpu_custom_call.1']
    #allocation13 [shape = 'u8[8192]{0}', space=vmem, size = 0x2000, scoped, tag = 'input window, operand 4, single buffered']
    #allocation14 [shape = 'u8[8192]{0}', space=vmem, size = 0x2000, scoped, tag = 'input window, operand 6, single buffered']
    #allocation15 [shape = 's32[1]{0}', space=sflag, size = 0x4, scoped, tag = 'scoped memory for tpu_custom_call.1']
    #allocation16 [shape = 'u8[8192]{0}', space=vmem, size = 0x2000, scoped, tag = 'input window, operand 8, single buffered']
    #allocation17 [shape = 'u8[8192]{0}', space=vmem, size = 0x2000, scoped, tag = 'input window, operand 10, single buffered']
    #allocation18 [shape = 's32[1]{0}', space=sflag, size = 0x4, scoped, tag = 'scoped memory for tpu_custom_call.1']
    #allocation19 [shape = 'u8[8192]{0}', space=vmem, size = 0x2000, scoped, tag = 'output window, operand 0']
    #allocation20 [shape = 'u8[16384]{0}', space=vmem, size = 0x4000, scoped, tag = 'output window, operand 1']
    #allocation21 [shape = 's32[2]{0}', space=sflag, size = 0x8, scoped, tag = 'scoped memory for tpu_custom_call.1']
    %19 = vsyncpa [#allocation6], 0
    %s20 = scalar_lea.sflag [#allocation6], 1
    %21 = vsyncpa %s20, 0
    %22 = vsyncpa [#allocation9], 0
    %s23 = scalar_lea.sflag [#allocation9], 1
    %24 = vsyncpa %s23, 0
    %25 = vsyncpa [#allocation12], 0
    %s26 = scalar_lea.sflag [#allocation12], 1
    %27 = vsyncpa %s26, 0
    %28 = vsyncpa [#allocation15], 0
    %29 = vsyncpa [#allocation18], 0
    %30 = vsyncpa [#allocation7], 0
    %s31 = scalar_lea.sflag [#allocation7], 1
    %32 = vsyncpa %s31, 0
    %33 = vsyncpa [#allocation21], 0
    %s34 = scalar_lea.sflag [#allocation21], 1
    %35 = vsyncpa %s34, 0
    loop: start=0, step=1, limit=4
    $region2: #{tpu_custom_call.1} parent=1 // loop_pre_header
      _
    $region3: #{tpu_custom_call.1} parent=1 // loop_header
      %s37 = sphi 0, %s41
      %p38 = scmp.ge.s32.totalorder %s37, 4
      %s44 = sphi 0, %s56
      %s45 = sphi 0, %s52
      %s46 = sphi 0, %s44
      %s47 = sphi 0, %s45
      %s48 = sphi 0, %s46
      %s49 = sphi 0, %s47
      %s61 = sphi 0, %s63
      %s64 = sphi 0, %s61
      %s65 = sphi 0, %s64
      %s81 = sphi 0, %s65
      %s87 = sphi 0, %s89
      %s90 = sphi 0, %s87
      %s91 = sphi 0, %s90
      %s107 = sphi 0, %s91
      %s113 = sphi 0, %s115
      %s116 = sphi 0, %s113
      %s117 = sphi 0, %s116
      %s133 = sphi 0, %s117
      %s141 = sphi 0, %s143
      %s144 = sphi 0, %s141
      %s145 = sphi 0, %s144
      %s161 = sphi 0, %s145
      %s165 = sphi 0, %s165
      %s167 = sphi 0, %s165
      %s168 = sphi 0, %s167
      %s182 = sphi 0, %s168
      %s186 = sphi 0, %s186
      %s188 = sphi 0, %s186
      %s189 = sphi 0, %s188
      %s203 = sphi 0, %s189
      %s207 = sphi 0, %s207
      %s209 = sphi 0, %s207
      %s210 = sphi 0, %s209
      %s224 = sphi 0, %s210
      %s228 = sphi 0, %s228
      %s230 = sphi 0, %s228
      %s231 = sphi 0, %s230
      %s245 = sphi 0, %s231
      %s249 = sphi 0, %s249
      %s251 = sphi 0, %s249
      %s252 = sphi 0, %s251
      %s266 = sphi 0, %s252
      %s270 = sphi 0, %s270
      %s272 = sphi 0, %s270
      %s273 = sphi 0, %s272
      %s287 = sphi 0, %s273
      %s291 = sphi 0, %s291
      %s293 = sphi 0, %s291
      %s294 = sphi 0, %s293
      %s308 = sphi 0, %s294
      %s312 = sphi 0, %s312
      %s314 = sphi 0, %s312
      %s315 = sphi 0, %s314
      %s329 = sphi 0, %s315
      %s337 = sphi 0, %s339
      %s340 = sphi 0, %s337
      %s341 = sphi 0, %s340
      %s357 = sphi 0, %s341
      %s365 = sphi 0, %s367
      %s368 = sphi 0, %s365
      %s369 = sphi 0, %s368
      %s385 = sphi 0, %s369
    $region4: #{tpu_custom_call.1} parent=1 // loop_header_branch
      %40 = sbr.rel (%p38) target = $region8
    $region5: #{tpu_custom_call.1} parent=1 // loop_body
      %s42 = ssub.s32 %s37, 1
      %s43 = ssub.s32 %s37, 2
      %s50 = sadd.s32 1, %s45
      %p51 = scmp.ge.s32.totalorder %s50, 1
      %s52 = scalar_select %p51, 0, %s50
      %s53 = sadd.s32 1, %s44
      %s54 = scalar_select %p51, %s53, %s44
      %p55 = scmp.ge.s32.totalorder %s54, 2
      %s56 = scalar_select %p55, 0, %s54
      %s57 = ssub.s32 %s44, %s56
      %s58 = ssub.s32 %s45, %s52
      %s59 = sor.u32 %s57, %s58
      %p60 = scmp.eq.s32.totalorder %s59, 0
      %s62 = sadd.s32 %s61, 1
      %s63 = scalar_select %p60, %s61, %s62
      %p66 = pneg %p60
      %p67 = scmp.eq.s32.totalorder %s37, 1
      %p68 = por %p66, %p67
      %p69 = scmp.ne.s32.totalorder %s61, %s64
      %p70 = scmp.eq.s32.totalorder %s37, 0
      %p71 = por %p69, %p70
      %p72 = scmp.ne.s32.totalorder %s61, %s64
      %p73 = scmp.eq.s32.totalorder %s42, 1
      %p74 = por %p72, %p73
      %p75 = scmp.ne.s32.totalorder %s64, %s65
      %p76 = scmp.eq.s32.totalorder %s42, 0
      %p77 = por %p75, %p76
      %p78 = scmp.ne.s32.totalorder %s64, %s65
      %p79 = scmp.eq.s32.totalorder %s43, 1
      %p80 = por %p78, %p79
      %p82 = scmp.ne.s32.totalorder %s65, %s81
      %p83 = scmp.eq.s32.totalorder %s43, 0
      %p84 = por %p82, %p83
      %s85 = ssub.s32 %s44, %s56
      %p86 = scmp.eq.s32.totalorder %s85, 0
      %s88 = sadd.s32 %s87, 1
      %s89 = scalar_select %p86, %s87, %s88
      %p92 = pneg %p86
      %p93 = scmp.eq.s32.totalorder %s37, 1
      %p94 = por %p92, %p93
      %p95 = scmp.ne.s32.totalorder %s87, %s90
      %p96 = scmp.eq.s32.totalorder %s37, 0
      %p97 = por %p95, %p96
      %p98 = scmp.ne.s32.totalorder %s87, %s90
      %p99 = scmp.eq.s32.totalorder %s42, 1
      %p100 = por %p98, %p99
      %p101 = scmp.ne.s32.totalorder %s90, %s91
      %p102 = scmp.eq.s32.totalorder %s42, 0
      %p103 = por %p101, %p102
      %p104 = scmp.ne.s32.totalorder %s90, %s91
      %p105 = scmp.eq.s32.totalorder %s43, 1
      %p106 = por %p104, %p105
      %p108 = scmp.ne.s32.totalorder %s91, %s107
      %p109 = scmp.eq.s32.totalorder %s43, 0
      %p110 = por %p108, %p109
      %s111 = ssub.s32 %s44, %s56
      %p112 = scmp.eq.s32.totalorder %s111, 0
      %s114 = sadd.s32 %s113, 1
      %s115 = scalar_select %p112, %s113, %s114
      %p118 = pneg %p112
      %p119 = scmp.eq.s32.totalorder %s37, 1
      %p120 = por %p118, %p119
      %p121 = scmp.ne.s32.totalorder %s113, %s116
      %p122 = scmp.eq.s32.totalorder %s37, 0
      %p123 = por %p121, %p122
      %p124 = scmp.ne.s32.totalorder %s113, %s116
      %p125 = scmp.eq.s32.totalorder %s42, 1
      %p126 = por %p124, %p125
      %p127 = scmp.ne.s32.totalorder %s116, %s117
      %p128 = scmp.eq.s32.totalorder %s42, 0
      %p129 = por %p127, %p128
      %p130 = scmp.ne.s32.totalorder %s116, %s117
      %p131 = scmp.eq.s32.totalorder %s43, 1
      %p132 = por %p130, %p131
      %p134 = scmp.ne.s32.totalorder %s117, %s133
      %p135 = scmp.eq.s32.totalorder %s43, 0
      %p136 = por %p134, %p135
      %s137 = ssub.s32 %s44, %s56
      %s138 = ssub.s32 %s45, %s52
      %s139 = sor.u32 %s137, %s138
      %p140 = scmp.eq.s32.totalorder %s139, 0
      %s142 = sadd.s32 %s141, 1
      %s143 = scalar_select %p140, %s141, %s142
      %p146 = pneg %p140
      %p147 = scmp.eq.s32.totalorder %s37, 1
      %p148 = por %p146, %p147
      %p149 = scmp.ne.s32.totalorder %s141, %s144
      %p150 = scmp.eq.s32.totalorder %s37, 0
      %p151 = por %p149, %p150
      %p152 = scmp.ne.s32.totalorder %s141, %s144
      %p153 = scmp.eq.s32.totalorder %s42, 1
      %p154 = por %p152, %p153
      %p155 = scmp.ne.s32.totalorder %s144, %s145
      %p156 = scmp.eq.s32.totalorder %s42, 0
      %p157 = por %p155, %p156
      %p158 = scmp.ne.s32.totalorder %s144, %s145
      %p159 = scmp.eq.s32.totalorder %s43, 1
      %p160 = por %p158, %p159
      %p162 = scmp.ne.s32.totalorder %s145, %s161
      %p163 = scmp.eq.s32.totalorder %s43, 0
      %p164 = por %p162, %p163
      %s166 = sadd.s32 %s165, 1
      %p169 = scmp.eq.s32.totalorder %s37, 1
      %p170 = scmp.ne.s32.totalorder %s165, %s167
      %p171 = scmp.eq.s32.totalorder %s37, 0
      %p172 = por %p170, %p171
      %p173 = scmp.ne.s32.totalorder %s165, %s167
      %p174 = scmp.eq.s32.totalorder %s42, 1
      %p175 = por %p173, %p174
      %p176 = scmp.ne.s32.totalorder %s167, %s168
      %p177 = scmp.eq.s32.totalorder %s42, 0
      %p178 = por %p176, %p177
      %p179 = scmp.ne.s32.totalorder %s167, %s168
      %p180 = scmp.eq.s32.totalorder %s43, 1
      %p181 = por %p179, %p180
      %p183 = scmp.ne.s32.totalorder %s168, %s182
      %p184 = scmp.eq.s32.totalorder %s43, 0
      %p185 = por %p183, %p184
      %s187 = sadd.s32 %s186, 1
      %p190 = scmp.eq.s32.totalorder %s37, 1
      %p191 = scmp.ne.s32.totalorder %s186, %s188
      %p192 = scmp.eq.s32.totalorder %s37, 0
      %p193 = por %p191, %p192
      %p194 = scmp.ne.s32.totalorder %s186, %s188
      %p195 = scmp.eq.s32.totalorder %s42, 1
      %p196 = por %p194, %p195
      %p197 = scmp.ne.s32.totalorder %s188, %s189
      %p198 = scmp.eq.s32.totalorder %s42, 0
      %p199 = por %p197, %p198
      %p200 = scmp.ne.s32.totalorder %s188, %s189
      %p201 = scmp.eq.s32.totalorder %s43, 1
      %p202 = por %p200, %p201
      %p204 = scmp.ne.s32.totalorder %s189, %s203
      %p205 = scmp.eq.s32.totalorder %s43, 0
      %p206 = por %p204, %p205
      %s208 = sadd.s32 %s207, 1
      %p211 = scmp.eq.s32.totalorder %s37, 1
      %p212 = scmp.ne.s32.totalorder %s207, %s209
      %p213 = scmp.eq.s32.totalorder %s37, 0
      %p214 = por %p212, %p213
      %p215 = scmp.ne.s32.totalorder %s207, %s209
      %p216 = scmp.eq.s32.totalorder %s42, 1
      %p217 = por %p215, %p216
      %p218 = scmp.ne.s32.totalorder %s209, %s210
      %p219 = scmp.eq.s32.totalorder %s42, 0
      %p220 = por %p218, %p219
      %p221 = scmp.ne.s32.totalorder %s209, %s210
      %p222 = scmp.eq.s32.totalorder %s43, 1
      %p223 = por %p221, %p222
      %p225 = scmp.ne.s32.totalorder %s210, %s224
      %p226 = scmp.eq.s32.totalorder %s43, 0
      %p227 = por %p225, %p226
      %s229 = sadd.s32 %s228, 1
      %p232 = scmp.eq.s32.totalorder %s37, 1
      %p233 = scmp.ne.s32.totalorder %s228, %s230
      %p234 = scmp.eq.s32.totalorder %s37, 0
      %p235 = por %p233, %p234
      %p236 = scmp.ne.s32.totalorder %s228, %s230
      %p237 = scmp.eq.s32.totalorder %s42, 1
      %p238 = por %p236, %p237
      %p239 = scmp.ne.s32.totalorder %s230, %s231
      %p240 = scmp.eq.s32.totalorder %s42, 0
      %p241 = por %p239, %p240
      %p242 = scmp.ne.s32.totalorder %s230, %s231
      %p243 = scmp.eq.s32.totalorder %s43, 1
      %p244 = por %p242, %p243
      %p246 = scmp.ne.s32.totalorder %s231, %s245
      %p247 = scmp.eq.s32.totalorder %s43, 0
      %p248 = por %p246, %p247
      %s250 = sadd.s32 %s249, 1
      %p253 = scmp.eq.s32.totalorder %s37, 1
      %p254 = scmp.ne.s32.totalorder %s249, %s251
      %p255 = scmp.eq.s32.totalorder %s37, 0
      %p256 = por %p254, %p255
      %p257 = scmp.ne.s32.totalorder %s249, %s251
      %p258 = scmp.eq.s32.totalorder %s42, 1
      %p259 = por %p257, %p258
      %p260 = scmp.ne.s32.totalorder %s251, %s252
      %p261 = scmp.eq.s32.totalorder %s42, 0
      %p262 = por %p260, %p261
      %p263 = scmp.ne.s32.totalorder %s251, %s252
      %p264 = scmp.eq.s32.totalorder %s43, 1
      %p265 = por %p263, %p264
      %p267 = scmp.ne.s32.totalorder %s252, %s266
      %p268 = scmp.eq.s32.totalorder %s43, 0
      %p269 = por %p267, %p268
      %s271 = sadd.s32 %s270, 1
      %p274 = scmp.eq.s32.totalorder %s37, 1
      %p275 = scmp.ne.s32.totalorder %s270, %s272
      %p276 = scmp.eq.s32.totalorder %s37, 0
      %p277 = por %p275, %p276
      %p278 = scmp.ne.s32.totalorder %s270, %s272
      %p279 = scmp.eq.s32.totalorder %s42, 1
      %p280 = por %p278, %p279
      %p281 = scmp.ne.s32.totalorder %s272, %s273
      %p282 = scmp.eq.s32.totalorder %s42, 0
      %p283 = por %p281, %p282
      %p284 = scmp.ne.s32.totalorder %s272, %s273
      %p285 = scmp.eq.s32.totalorder %s43, 1
      %p286 = por %p284, %p285
      %p288 = scmp.ne.s32.totalorder %s273, %s287
      %p289 = scmp.eq.s32.totalorder %s43, 0
      %p290 = por %p288, %p289
      %s292 = sadd.s32 %s291, 1
      %p295 = scmp.eq.s32.totalorder %s37, 1
      %p296 = scmp.ne.s32.totalorder %s291, %s293
      %p297 = scmp.eq.s32.totalorder %s37, 0
      %p298 = por %p296, %p297
      %p299 = scmp.ne.s32.totalorder %s291, %s293
      %p300 = scmp.eq.s32.totalorder %s42, 1
      %p301 = por %p299, %p300
      %p302 = scmp.ne.s32.totalorder %s293, %s294
      %p303 = scmp.eq.s32.totalorder %s42, 0
      %p304 = por %p302, %p303
      %p305 = scmp.ne.s32.totalorder %s293, %s294
      %p306 = scmp.eq.s32.totalorder %s43, 1
      %p307 = por %p305, %p306
      %p309 = scmp.ne.s32.totalorder %s294, %s308
      %p310 = scmp.eq.s32.totalorder %s43, 0
      %p311 = por %p309, %p310
      %s313 = sadd.s32 %s312, 1
      %p316 = scmp.eq.s32.totalorder %s37, 1
      %p317 = scmp.ne.s32.totalorder %s312, %s314
      %p318 = scmp.eq.s32.totalorder %s37, 0
      %p319 = por %p317, %p318
      %p320 = scmp.ne.s32.totalorder %s312, %s314
      %p321 = scmp.eq.s32.totalorder %s42, 1
      %p322 = por %p320, %p321
      %p323 = scmp.ne.s32.totalorder %s314, %s315
      %p324 = scmp.eq.s32.totalorder %s42, 0
      %p325 = por %p323, %p324
      %p326 = scmp.ne.s32.totalorder %s314, %s315
      %p327 = scmp.eq.s32.totalorder %s43, 1
      %p328 = por %p326, %p327
      %p330 = scmp.ne.s32.totalorder %s315, %s329
      %p331 = scmp.eq.s32.totalorder %s43, 0
      %p332 = por %p330, %p331
      %s333 = ssub.s32 %s44, %s56
      %s334 = ssub.s32 %s45, %s52
      %s335 = sor.u32 %s333, %s334
      %p336 = scmp.eq.s32.totalorder %s335, 0
      %s338 = sadd.s32 %s337, 1
      %s339 = scalar_select %p336, %s337, %s338
      %p342 = pneg %p336
      %p343 = scmp.eq.s32.totalorder %s37, 1
      %p344 = por %p342, %p343
      %p345 = scmp.ne.s32.totalorder %s337, %s340
      %p346 = scmp.eq.s32.totalorder %s37, 0
      %p347 = por %p345, %p346
      %p348 = scmp.ne.s32.totalorder %s337, %s340
      %p349 = scmp.eq.s32.totalorder %s42, 1
      %p350 = por %p348, %p349
      %p351 = scmp.ne.s32.totalorder %s340, %s341
      %p352 = scmp.eq.s32.totalorder %s42, 0
      %p353 = por %p351, %p352
      %p354 = scmp.ne.s32.totalorder %s340, %s341
      %p355 = scmp.eq.s32.totalorder %s43, 1
      %p356 = por %p354, %p355
      %p358 = scmp.ne.s32.totalorder %s341, %s357
      %p359 = scmp.eq.s32.totalorder %s43, 0
      %p360 = por %p358, %p359
      %s361 = ssub.s32 %s44, %s56
      %s362 = ssub.s32 %s45, %s52
      %s363 = sor.u32 %s361, %s362
      %p364 = scmp.eq.s32.totalorder %s363, 0
      %s366 = sadd.s32 %s365, 1
      %s367 = scalar_select %p364, %s365, %s366
      %p370 = pneg %p364
      %p371 = scmp.eq.s32.totalorder %s37, 1
      %p372 = por %p370, %p371
      %p373 = scmp.ne.s32.totalorder %s365, %s368
      %p374 = scmp.eq.s32.totalorder %s37, 0
      %p375 = por %p373, %p374
      %p376 = scmp.ne.s32.totalorder %s365, %s368
      %p377 = scmp.eq.s32.totalorder %s42, 1
      %p378 = por %p376, %p377
      %p379 = scmp.ne.s32.totalorder %s368, %s369
      %p380 = scmp.eq.s32.totalorder %s42, 0
      %p381 = por %p379, %p380
      %p382 = scmp.ne.s32.totalorder %s368, %s369
      %p383 = scmp.eq.s32.totalorder %s43, 1
      %p384 = por %p382, %p383
      %p386 = scmp.ne.s32.totalorder %s369, %s385
      %p387 = scmp.eq.s32.totalorder %s43, 0
      %p388 = por %p386, %p387
      %p389 = scmp.le.s32.totalorder 1, %s37
      %p390 = scmp.lt.s32.totalorder %s37, 3
      %p391 = pnand %p389, %p390
      %p392 = pneg %p391
      // Predicated region
      $region9: #{tpu_custom_call.1} parent=5 // pred_check
        _
      $region10: #{tpu_custom_call.1} parent=5 // pred_check_branch
        %394 = sbr.rel (%p391) target = $region12
      $region11: #{tpu_custom_call.1} parent=5 // pred_region
        %s395 = ssub.s32 %s37, 1
        // Predicated region
        $region13: #{tpu_custom_call.1} parent=11 // pred_check
          %p396 = pneg %p178
        $region14: #{tpu_custom_call.1} parent=11 // pred_check_branch
          %398 = sbr.rel (%p396) target = $region16
        $region15: #{tpu_custom_call.1} parent=11 // pred_region
          %400 = vsyncadd [#allocation12], 0
          %s401 = sshll.u32 %s4, 4
          %s402 = int_to_ptr.hbm [resolvable:$true] %s401
          %s403 = sshll.u32 [#allocation13], 4
          %s404 = int_to_ptr.vmem [resolvable:$true] %s403
          %409 = dma.hbm_to_vmem [thread:$0]  %s402, 256, %s404, [#allocation12], 64, 64, 4
        $region16: #{tpu_custom_call.1} parent=11 // pred_fallthru
          _
        // Predicated region
        $region17: #{tpu_custom_call.1} parent=11 // pred_check
          %p410 = pneg %p199
        $region18: #{tpu_custom_call.1} parent=11 // pred_check_branch
          %412 = sbr.rel (%p410) target = $region20
        $region19: #{tpu_custom_call.1} parent=11 // pred_region
          _
        $region20: #{tpu_custom_call.1} parent=11 // pred_fallthru
          _
        // Predicated region
        $region21: #{tpu_custom_call.1} parent=11 // pred_check
          %p413 = pneg %p220
        $region22: #{tpu_custom_call.1} parent=11 // pred_check_branch
          %415 = sbr.rel (%p413) target = $region24
        $region23: #{tpu_custom_call.1} parent=11 // pred_region
          %417 = vsyncadd [#allocation15], 0
          %s418 = sshll.u32 %s6, 4
          %s419 = int_to_ptr.hbm [resolvable:$true] %s418
          %s420 = sshll.u32 [#allocation14], 4
          %s421 = int_to_ptr.vmem [resolvable:$true] %s420
          %426 = dma.hbm_to_vmem [thread:$0]  %s419, 256, %s421, [#allocation15], 64, 64, 4
        $region24: #{tpu_custom_call.1} parent=11 // pred_fallthru
          _
        // Predicated region
        $region25: #{tpu_custom_call.1} parent=11 // pred_check
          %p427 = pneg %p241
        $region26: #{tpu_custom_call.1} parent=11 // pred_check_branch
          %429 = sbr.rel (%p427) target = $region28
        $region27: #{tpu_custom_call.1} parent=11 // pred_region
          _
        $region28: #{tpu_custom_call.1} parent=11 // pred_fallthru
          _
        // Predicated region
        $region29: #{tpu_custom_call.1} parent=11 // pred_check
          %p430 = pneg %p262
        $region30: #{tpu_custom_call.1} parent=11 // pred_check_branch
          %432 = sbr.rel (%p430) target = $region32
        $region31: #{tpu_custom_call.1} parent=11 // pred_region
          %434 = vsyncadd [#allocation15], 0
          %s435 = sshll.u32 %s8, 4
          %s436 = int_to_ptr.hbm [resolvable:$true] %s435
          %s437 = sshll.u32 [#allocation16], 4
          %s438 = int_to_ptr.vmem [resolvable:$true] %s437
          %443 = dma.hbm_to_vmem [thread:$0]  %s436, 256, %s438, [#allocation15], 64, 64, 4
        $region32: #{tpu_custom_call.1} parent=11 // pred_fallthru
          _
        // Predicated region
        $region33: #{tpu_custom_call.1} parent=11 // pred_check
          %p444 = pneg %p283
        $region34: #{tpu_custom_call.1} parent=11 // pred_check_branch
          %446 = sbr.rel (%p444) target = $region36
        $region35: #{tpu_custom_call.1} parent=11 // pred_region
          _
        $region36: #{tpu_custom_call.1} parent=11 // pred_fallthru
          _
        // Predicated region
        $region37: #{tpu_custom_call.1} parent=11 // pred_check
          %p447 = pneg %p304
        $region38: #{tpu_custom_call.1} parent=11 // pred_check_branch
          %449 = sbr.rel (%p447) target = $region40
        $region39: #{tpu_custom_call.1} parent=11 // pred_region
          %451 = vsyncadd [#allocation18], 0
          %s452 = sshll.u32 %s10, 4
          %s453 = int_to_ptr.hbm [resolvable:$true] %s452
          %s454 = sshll.u32 [#allocation17], 4
          %s455 = int_to_ptr.vmem [resolvable:$true] %s454
          %460 = dma.hbm_to_vmem [thread:$0]  %s453, 256, %s455, [#allocation18], 64, 64, 4
        $region40: #{tpu_custom_call.1} parent=11 // pred_fallthru
          _
        // Predicated region
        $region41: #{tpu_custom_call.1} parent=11 // pred_check
          %p461 = pneg %p325
        $region42: #{tpu_custom_call.1} parent=11 // pred_check_branch
          %463 = sbr.rel (%p461) target = $region44
        $region43: #{tpu_custom_call.1} parent=11 // pred_region
          _
        $region44: #{tpu_custom_call.1} parent=11 // pred_fallthru
          _
      $region12: #{tpu_custom_call.1} parent=5 // pred_fallthru
        _
      %p464 = scmp.lt.s32.totalorder %s37, 2
      // Predicated region
      $region45: #{tpu_custom_call.1} parent=5 // pred_check
        %p465 = pneg %p464
      $region46: #{tpu_custom_call.1} parent=5 // pred_check_branch
        %467 = sbr.rel (%p465) target = $region48
      $region47: #{tpu_custom_call.1} parent=5 // pred_region
        // Predicated region
        $region49: #{tpu_custom_call.1} parent=47 // pred_check
          %p468 = pneg %p71
        $region50: #{tpu_custom_call.1} parent=47 // pred_check_branch
          %470 = sbr.rel (%p468) target = $region52
        $region51: #{tpu_custom_call.1} parent=47 // pred_region
          %s471 = sand.u32 %s61, 1
          %s472 = scalar_lea.sflag [#allocation6], %s471
          %s473 = sand.u32 %s61, 1
          %s474 = smul.addr %s473, 4
          %s475 = scalar_lea.vmem [#allocation5], %s474
          %477 = vsyncadd %s472, 0
          %s478 = sadd.s32 %s45, %s44
          %s479 = smul.addr %s478, 4
          %s480 = scalar_lea.hbm %s0, %s479
          %s482 = sshll.u32 %s480, 4
          %s483 = int_to_ptr.hbm [resolvable:$true] %s482
          %s484 = sshll.u32 %s475, 4
          %s485 = int_to_ptr.vmem [resolvable:$true] %s484
          %487 = dma.hbm_to_vmem [thread:$0]  %s483, 64, %s485, %s472
        $region52: #{tpu_custom_call.1} parent=47 // pred_fallthru
          _
        // Predicated region
        $region53: #{tpu_custom_call.1} parent=47 // pred_check
          %p488 = pneg %p97
        $region54: #{tpu_custom_call.1} parent=47 // pred_check_branch
          %490 = sbr.rel (%p488) target = $region56
        $region55: #{tpu_custom_call.1} parent=47 // pred_region
          %s491 = sand.u32 %s37, 1
          %s492 = scalar_lea.sflag [#allocation9], %s491
          %s493 = sand.u32 %s87, 1
          %s494 = smul.addr %s493, 4
          %s495 = scalar_lea.vmem [#allocation8], %s494
          %497 = vsyncadd %s492, 0
          %s498 = smul.addr %s44, 4
          %s499 = scalar_lea.hbm %s1, %s498
          %s501 = sshll.u32 %s499, 4
          %s502 = int_to_ptr.hbm [resolvable:$true] %s501
          %s503 = sshll.u32 %s495, 4
          %s504 = int_to_ptr.vmem [resolvable:$true] %s503
          %506 = dma.hbm_to_vmem [thread:$0]  %s502, 64, %s504, %s492
        $region56: #{tpu_custom_call.1} parent=47 // pred_fallthru
          _
        // Predicated region
        $region57: #{tpu_custom_call.1} parent=47 // pred_check
          %p507 = pneg %p123
        $region58: #{tpu_custom_call.1} parent=47 // pred_check_branch
          %509 = sbr.rel (%p507) target = $region60
        $region59: #{tpu_custom_call.1} parent=47 // pred_region
          %s510 = sand.u32 %s37, 1
          %s511 = scalar_lea.sflag [#allocation9], %s510
          %s512 = sand.u32 %s113, 1
          %s513 = smul.addr %s512, 4
          %s514 = scalar_lea.vmem [#allocation10], %s513
          %516 = vsyncadd %s511, 0
          %s517 = smul.addr %s44, 4
          %s518 = scalar_lea.hbm %s2, %s517
          %s520 = sshll.u32 %s518, 4
          %s521 = int_to_ptr.hbm [resolvable:$true] %s520
          %s522 = sshll.u32 %s514, 4
          %s523 = int_to_ptr.vmem [resolvable:$true] %s522
          %525 = dma.hbm_to_vmem [thread:$0]  %s521, 64, %s523, %s511
        $region60: #{tpu_custom_call.1} parent=47 // pred_fallthru
          _
        // Predicated region
        $region61: #{tpu_custom_call.1} parent=47 // pred_check
          %p526 = pneg %p151
        $region62: #{tpu_custom_call.1} parent=47 // pred_check_branch
          %528 = sbr.rel (%p526) target = $region64
        $region63: #{tpu_custom_call.1} parent=47 // pred_region
          %s529 = sand.u32 %s37, 1
          %s530 = scalar_lea.sflag [#allocation12], %s529
          %s531 = sand.u32 %s141, 1
          %s532 = smul.addr %s531, 2
          %s533 = scalar_lea.vmem [#allocation11], %s532
          %535 = vsyncadd %s530, 0
          %s536 = sadd.s32 %s45, %s44
          %s537 = smul.addr %s536, 2
          %s538 = scalar_lea.hbm %s3, %s537
          %s540 = sshll.u32 %s538, 4
          %s541 = int_to_ptr.hbm [resolvable:$true] %s540
          %s542 = sshll.u32 %s533, 4
          %s543 = int_to_ptr.vmem [resolvable:$true] %s542
          %545 = dma.hbm_to_vmem [thread:$0]  %s541, 32, %s543, %s530
        $region64: #{tpu_custom_call.1} parent=47 // pred_fallthru
          _
      $region48: #{tpu_custom_call.1} parent=5 // pred_fallthru
        _
      %p546 = scmp.le.s32.totalorder 1, %s37
      %p547 = scmp.lt.s32.totalorder %s37, 3
      %p548 = pnand %p546, %p547
      %p549 = pneg %p548
      // Predicated region
      $region65: #{tpu_custom_call.1} parent=5 // pred_check
        _
      $region66: #{tpu_custom_call.1} parent=5 // pred_check_branch
        %551 = sbr.rel (%p548) target = $region68
      $region67: #{tpu_custom_call.1} parent=5 // pred_region
        %s552 = ssub.s32 %s37, 1
        %s553 = sand.u32 %s64, 1
        %s554 = scalar_lea.sflag [#allocation6], %s553
        %s555 = sand.u32 %s64, 1
        %s556 = smul.addr %s555, 4
        %s557 = scalar_lea.vmem [#allocation5], %s556
        // Predicated region
        $region69: #{tpu_custom_call.1} parent=67 // pred_check
          %p558 = pneg %p77
        $region70: #{tpu_custom_call.1} parent=67 // pred_check_branch
          %560 = sbr.rel (%p558) target = $region72
        $region71: #{tpu_custom_call.1} parent=67 // pred_region
          %562 = dma.done %s554, 64
        $region72: #{tpu_custom_call.1} parent=67 // pred_fallthru
          _
        %s563 = sand.u32 %s42, 1
        %s564 = scalar_lea.sflag [#allocation9], %s563
        %s565 = sand.u32 %s90, 1
        %s566 = smul.addr %s565, 4
        %s567 = scalar_lea.vmem [#allocation8], %s566
        // Predicated region
        $region73: #{tpu_custom_call.1} parent=67 // pred_check
          %p568 = pneg %p103
        $region74: #{tpu_custom_call.1} parent=67 // pred_check_branch
          %570 = sbr.rel (%p568) target = $region76
        $region75: #{tpu_custom_call.1} parent=67 // pred_region
          %572 = dma.done %s564, 64
        $region76: #{tpu_custom_call.1} parent=67 // pred_fallthru
          _
        %s573 = sand.u32 %s42, 1
        %s574 = scalar_lea.sflag [#allocation9], %s573
        %s575 = sand.u32 %s116, 1
        %s576 = smul.addr %s575, 4
        %s577 = scalar_lea.vmem [#allocation10], %s576
        // Predicated region
        $region77: #{tpu_custom_call.1} parent=67 // pred_check
          %p578 = pneg %p129
        $region78: #{tpu_custom_call.1} parent=67 // pred_check_branch
          %580 = sbr.rel (%p578) target = $region80
        $region79: #{tpu_custom_call.1} parent=67 // pred_region
          %582 = dma.done %s574, 64
        $region80: #{tpu_custom_call.1} parent=67 // pred_fallthru
          _
        %s583 = sand.u32 %s42, 1
        %s584 = scalar_lea.sflag [#allocation12], %s583
        %s585 = sand.u32 %s144, 1
        %s586 = smul.addr %s585, 2
        %s587 = scalar_lea.vmem [#allocation11], %s586
        // Predicated region
        $region81: #{tpu_custom_call.1} parent=67 // pred_check
          %p588 = pneg %p157
        $region82: #{tpu_custom_call.1} parent=67 // pred_check_branch
          %590 = sbr.rel (%p588) target = $region84
        $region83: #{tpu_custom_call.1} parent=67 // pred_region
          %592 = dma.done %s584, 32
        $region84: #{tpu_custom_call.1} parent=67 // pred_fallthru
          _
        // Predicated region
        $region85: #{tpu_custom_call.1} parent=67 // pred_check
          %p593 = pneg %p178
        $region86: #{tpu_custom_call.1} parent=67 // pred_check_branch
          %595 = sbr.rel (%p593) target = $region88
        $region87: #{tpu_custom_call.1} parent=67 // pred_region
          %597 = dma.done [#allocation12], 256
        $region88: #{tpu_custom_call.1} parent=67 // pred_fallthru
          _
        // Predicated region
        $region89: #{tpu_custom_call.1} parent=67 // pred_check
          %p598 = pneg %p220
        $region90: #{tpu_custom_call.1} parent=67 // pred_check_branch
          %600 = sbr.rel (%p598) target = $region92
        $region91: #{tpu_custom_call.1} parent=67 // pred_region
          %602 = dma.done [#allocation15], 256
        $region92: #{tpu_custom_call.1} parent=67 // pred_fallthru
          _
        // Predicated region
        $region93: #{tpu_custom_call.1} parent=67 // pred_check
          %p603 = pneg %p262
        $region94: #{tpu_custom_call.1} parent=67 // pred_check_branch
          %605 = sbr.rel (%p603) target = $region96
        $region95: #{tpu_custom_call.1} parent=67 // pred_region
          %607 = dma.done [#allocation15], 256
        $region96: #{tpu_custom_call.1} parent=67 // pred_fallthru
          _
        // Predicated region
        $region97: #{tpu_custom_call.1} parent=67 // pred_check
          %p608 = pneg %p304
        $region98: #{tpu_custom_call.1} parent=67 // pred_check_branch
          %610 = sbr.rel (%p608) target = $region100
        $region99: #{tpu_custom_call.1} parent=67 // pred_region
          %612 = dma.done [#allocation18], 256
        $region100: #{tpu_custom_call.1} parent=67 // pred_fallthru
          _
        %s613 = sand.u32 %s64, 1
        %s614 = scalar_lea.sflag [#allocation6], %s613
        %s615 = sand.u32 %s64, 1
        %s616 = smul.addr %s615, 4
        %s617 = scalar_lea.vmem [#allocation5], %s616
        %p618 = pneg %p77
        %p619 = pneg %p74
        %s620 = sand.u32 %s42, 1
        %s621 = scalar_lea.sflag [#allocation9], %s620
        %s622 = sand.u32 %s90, 1
        %s623 = smul.addr %s622, 4
        %s624 = scalar_lea.vmem [#allocation8], %s623
        %p625 = pneg %p103
        %p626 = pneg %p100
        %s627 = sand.u32 %s42, 1
        %s628 = scalar_lea.sflag [#allocation9], %s627
        %s629 = sand.u32 %s116, 1
        %s630 = smul.addr %s629, 4
        %s631 = scalar_lea.vmem [#allocation10], %s630
        %p632 = pneg %p129
        %p633 = pneg %p126
        %s634 = sand.u32 %s42, 1
        %s635 = scalar_lea.sflag [#allocation12], %s634
        %s636 = sand.u32 %s144, 1
        %s637 = smul.addr %s636, 2
        %s638 = scalar_lea.vmem [#allocation11], %s637
        %p639 = pneg %p157
        %p640 = pneg %p154
        %p641 = pneg %p178
        %p642 = pneg %p175
        %p643 = pneg %p199
        %p644 = pneg %p196
        %p645 = pneg %p220
        %p646 = pneg %p217
        %p647 = pneg %p241
        %p648 = pneg %p238
        %p649 = pneg %p262
        %p650 = pneg %p259
        %p651 = pneg %p283
        %p652 = pneg %p280
        %p653 = pneg %p304
        %p654 = pneg %p301
        %p655 = pneg %p325
        %p656 = pneg %p322
        %p657 = pneg %p353
        %p658 = pneg %p350
        %s659 = sand.u32 %s340, 1
        %s660 = scalar_lea.sflag [#allocation7], %s659
        %s661 = sand.u32 %s340, 1
        %s662 = smul.addr %s661, 8
        %s663 = scalar_lea.vmem [#allocation19], %s662
        %p664 = pneg %p381
        %p665 = pneg %p378
        %s666 = sand.u32 %s368, 1
        %s667 = scalar_lea.sflag [#allocation21], %s666
        %s668 = sand.u32 %s368, 1
        %s669 = smul.addr %s668, 16
        %s670 = scalar_lea.vmem [#allocation20], %s669
        %p674 = scmp.eq.s32.totalorder %s47, 0
        // Predicated region
        $region101: #{tpu_custom_call.1} parent=67 // pred_check
          %p675 = pneg %p674
        $region102: #{tpu_custom_call.1} parent=67 // pred_check_branch
          %677 = sbr.rel (%p675) target = $region104
        $region103: #{tpu_custom_call.1} parent=67 // pred_region
          %v678 = vld [vmem:[%s567] sm:$0xf]
          %v679 = vld [vmem:[#allocation14] sm:$0xf]
          %v680 = vld [vmem:[#allocation14 + $0x4] sm:$0xf]
          %v681 = vld [vmem:[#allocation14 + $0x8] sm:$0xf]
          %v682 = vld [vmem:[#allocation14 + $0xc] sm:$0xf]
          %v683 = vld [vmem:[%s7] sm:$0x1]
          %v685 = vperm.slane %v683, 0
          %v691 = vunpack.c.l.b16 %v679
          %v692 = vunpack.c.l.b16 %v680
          %v693 = vunpack.c.l.b16 %v681
          %v694 = vunpack.c.l.b16 %v682
          %v695 = vpack.c.b16 %v692, %v691
          %v696 = vpack.c.b16 %v694, %v693
          %vm699 = vcmask 261120
          %v701 = vsel %vm699, %v678, 0
          %703 = vmatpush.bf16.msra.mxu0 0
          %704 = vmatpush.bf16.msra.mxu0 0
          %705 = vmatpush.bf16.msra.mxu0 0
          %706 = vmatpush.bf16.msra.mxu0 0
          %707 = vmatpush.bf16.msra.mxu0 0
          %708 = vmatpush.bf16.msra.mxu0 0
          %709 = vmatpush.bf16.msra.mxu0 %v696
          %710 = vmatpush.bf16.msra.mxu0 %v695
          %711 = vmatmul.bf16.gmra.mxu0 %v701
          %v712 = vpop.f32.mrf.mxu0
          %v713 = vadd.f32 %v685, %v712
          %v714 = vpop.f32.mrf.mxu0
          %715 = vdwg.mxu0
          %v716 = vpack.c.bf16 %v713, %v713
          %vm717 = vcmask 257024
          %718 = vst.msk [vmem:[#allocation2] sm:$0xf] %vm717, %v716
          %v719 = vld [vmem:[%s577] sm:$0xf]
          %v720 = vld [vmem:[#allocation16] sm:$0xf]
          %v721 = vld [vmem:[#allocation16 + $0x4] sm:$0xf]
          %v722 = vld [vmem:[#allocation16 + $0x8] sm:$0xf]
          %v723 = vld [vmem:[#allocation16 + $0xc] sm:$0xf]
          %v724 = vld [vmem:[%s9] sm:$0x1]
          %v726 = vperm.slane %v724, 0
          %v732 = vunpack.c.l.b16 %v720
          %v733 = vunpack.c.l.b16 %v721
          %v734 = vunpack.c.l.b16 %v722
          %v735 = vunpack.c.l.b16 %v723
          %v736 = vpack.c.b16 %v733, %v732
          %v737 = vpack.c.b16 %v735, %v734
          %v741 = vsel %vm699, %v719, 0
          %743 = vmatpush.bf16.msra.mxu0 0
          %744 = vmatpush.bf16.msra.mxu0 0
          %745 = vmatpush.bf16.msra.mxu0 0
          %746 = vmatpush.bf16.msra.mxu0 0
          %747 = vmatpush.bf16.msra.mxu0 0
          %748 = vmatpush.bf16.msra.mxu0 0
          %749 = vmatpush.bf16.msra.mxu0 %v737
          %750 = vmatpush.bf16.msra.mxu0 %v736
          %751 = vmatmul.bf16.gmra.mxu0 %v741
          %v752 = vpop.f32.mrf.mxu0
          %v753 = vadd.f32 %v726, %v752
          %v754 = vpop.f32.mrf.mxu0
          %755 = vdwg.mxu0
          %v756 = vpack.c.bf16 %v753, %v753
          %757 = vst.msk [vmem:[#allocation3] sm:$0xf] %vm717, %v756
        $region104: #{tpu_custom_call.1} parent=67 // pred_fallthru
          _
        %v758 = vld [vmem:[%s557] sm:$0xf]
        %v759 = vld [vmem:[#allocation13] sm:$0xf]
        %v760 = vld [vmem:[#allocation13 + $0x4] sm:$0xf]
        %v761 = vld [vmem:[#allocation13 + $0x8] sm:$0xf]
        %v762 = vld [vmem:[#allocation13 + $0xc] sm:$0xf]
        %v763 = vld [vmem:[%s5] sm:$0x1]
        %v765 = vperm.slane %v763, 0
        %v771 = vunpack.c.l.b16 %v759
        %v772 = vunpack.c.l.b16 %v760
        %v773 = vunpack.c.l.b16 %v761
        %v774 = vunpack.c.l.b16 %v762
        %v775 = vpack.c.b16 %v772, %v771
        %v776 = vpack.c.b16 %v774, %v773
        %vm779 = vcmask 261120
        %v781 = vsel %vm779, %v758, 0
        %783 = vmatpush.bf16.msra.mxu0 0
        %784 = vmatpush.bf16.msra.mxu0 0
        %785 = vmatpush.bf16.msra.mxu0 0
        %786 = vmatpush.bf16.msra.mxu0 0
        %787 = vmatpush.bf16.msra.mxu0 0
        %788 = vmatpush.bf16.msra.mxu0 0
        %789 = vmatpush.bf16.msra.mxu0 %v776
        %790 = vmatpush.bf16.msra.mxu0 %v775
        %791 = vmatmul.bf16.gmra.mxu0 %v781
        %v792 = vpop.f32.mrf.mxu0
        %v793 = vadd.f32 %v765, %v792
        %v794 = vpop.f32.mrf.mxu0
        %795 = vdwg.mxu0
        %v796 = vpack.c.bf16 %v793, %v793
        %v797 = vld [vmem:[#allocation2] sm:$0xf]
        %v798 = vld [vmem:[#allocation3] sm:$0xf]
        %v799 = vld [vmem:[%s587] sm:$0x3]
        %vm800 = vnez %v799
        %vm801 = vcmask 64512
        %v803 = vsel %vm801, %v796, 0
        %v806 = vsel %vm801, %v797, 0
        %808 = vmatpush.bf16.xpose.msra.mxu0 0
        %809 = vmatpush.bf16.xpose.msra.mxu0 0
        %810 = vmatpush.bf16.xpose.msra.mxu0 0
        %811 = vmatpush.bf16.xpose.msra.mxu0 0
        %812 = vmatpush.bf16.xpose.msra.mxu0 0
        %813 = vmatpush.bf16.xpose.msra.mxu0 0
        %814 = vmatpush.bf16.xpose.msra.mxu0 0
        %815 = vmatpush.bf16.xpose.msra.mxu0 %v806
        %816 = vmatmul.bf16.gmra.mxu0 %v803
        %v817 = vpop.f32.mrf.mxu0
        %v818 = vadd.f32 0.0, %v817
        %v819 = vpop.f32.mrf.mxu0
        %820 = vdwg.mxu0
        %v821 = vmul.f32 %v818, 0.35355338
        %v822 = vsel %vm800, 16843009, 0
        %v823 = vunpack.c.0.s8 %v822
        %vm824 = vcmp.ne.s32.totalorder %v823, 0
        %v825 = vsel %vm824, -1e+09, %v821
        %v826 = vsel %vm801, %v825, -inf
        %827 = vmax.xlane.f32.xlu0 %v826
        %v828 = vpop.xlane.xlu0 %827
        %v829 = vsub.f32 %v825, %v828
        %v830 = vmul.f32 %v829, 1.442695
        %v831 = vpow.pop %v830
        %v832 = vsel %vm801, %v831, 0.0
        %833 = vadd.xlane.f32.xlu0 %v832
        %v834 = vpop.xlane.xlu0 %833
        %v835 = vrcp.pop %v834
        %v836 = vmul.f32 %v834, %v835
        %v837 = vsub.f32 1.0, %v836
        %v838 = vmul.f32 %v835, %v837
        %v839 = vadd.f32 %v835, %v838
        %vm840 = vweird.f32 %v834
        %vm841 = vweird.f32 %v835
        %vm842 = vmor %vm840, %vm841
        %v843 = vsel %vm842, %v835, %v839
        %v844 = vand.u32 2147483647, %v834
        %vm845 = vcmp.eq.f32.partialorder %v844, 8.507059e+37
        %v846 = vand.u32 %v834, 2147483648
        %v847 = vor.u32 1.1754944e-38, %v846
        %v848 = vsel %vm845, %v847, %v843
        %v849 = vmul.f32 %v831, %v848
        %v850 = vpack.c.bf16 %v849, %v849
        %vm851 = vcmask 60416
        %852 = vst.msk [vmem:[%s670] sm:$0xf] %vm851, %v850
        %v854 = vsel %vm801, %v850, 0
        %vm856 = vcmask 1043456
        %v858 = vsel %vm856, %v798, 0
        %860 = vmatpush.bf16.msra.mxu0 0
        %861 = vmatpush.bf16.msra.mxu0 0
        %862 = vmatpush.bf16.msra.mxu0 0
        %863 = vmatpush.bf16.msra.mxu0 0
        %864 = vmatpush.bf16.msra.mxu0 0
        %865 = vmatpush.bf16.msra.mxu0 0
        %866 = vmatpush.bf16.msra.mxu0 0
        %867 = vmatpush.bf16.msra.mxu0 %v858
        %868 = vmatmul.bf16.gmra.mxu0 %v854
        %v869 = vpop.f32.mrf.mxu0
        %v870 = vadd.f32 0.0, %v869
        %v871 = vpop.f32.mrf.mxu0
        %872 = vdwg.mxu0
        %873 = vst.msk [vmem:[#allocation4] sm:$0xff] %vm801, %v870
        %v875 = vunpack.c.l.b16 %v796
        %v876 = vpack.c.b16 %v875, %v875
        %877 = vrot.lane.b32.xlu0 %v876, 120
        %v878 = vpop.permute.xlu0 %877
        %v880 = vunpack.c.l.b16 %v797
        %v881 = vpack.c.b16 %v880, %v880
        %882 = vrot.lane.b32.xlu0 %v881, 120
        %v883 = vpop.permute.xlu0 %882
        %v885 = vsel %vm801, %v878, 0
        %v888 = vsel %vm801, %v883, 0
        %890 = vmatpush.bf16.xpose.msra.mxu0 0
        %891 = vmatpush.bf16.xpose.msra.mxu0 0
        %892 = vmatpush.bf16.xpose.msra.mxu0 0
        %893 = vmatpush.bf16.xpose.msra.mxu0 0
        %894 = vmatpush.bf16.xpose.msra.mxu0 0
        %895 = vmatpush.bf16.xpose.msra.mxu0 0
        %896 = vmatpush.bf16.xpose.msra.mxu0 0
        %897 = vmatpush.bf16.xpose.msra.mxu0 %v888
        %898 = vmatmul.bf16.gmra.mxu0 %v885
        %v899 = vpop.f32.mrf.mxu0
        %v900 = vadd.f32 0.0, %v899
        %v901 = vpop.f32.mrf.mxu0
        %902 = vdwg.mxu0
        %v903 = vmul.f32 %v900, 0.35355338
        %v904 = vsel %vm824, -1e+09, %v903
        %v905 = vsel %vm801, %v904, -inf
        %906 = vmax.xlane.f32.xlu0 %v905
        %v907 = vpop.xlane.xlu0 %906
        %v908 = vsub.f32 %v904, %v907
        %v909 = vmul.f32 %v908, 1.442695
        %v910 = vpow.pop %v909
        %v911 = vsel %vm801, %v910, 0.0
        %912 = vadd.xlane.f32.xlu0 %v911
        %v913 = vpop.xlane.xlu0 %912
        %v914 = vrcp.pop %v913
        %v915 = vmul.f32 %v913, %v914
        %v916 = vsub.f32 1.0, %v915
        %v917 = vmul.f32 %v914, %v916
        %v918 = vadd.f32 %v914, %v917
        %vm919 = vweird.f32 %v913
        %vm920 = vweird.f32 %v914
        %vm921 = vmor %vm919, %vm920
        %v922 = vsel %vm921, %v914, %v918
        %v923 = vand.u32 2147483647, %v913
        %vm924 = vcmp.eq.f32.partialorder %v923, 8.507059e+37
        %v925 = vand.u32 %v913, 2147483648
        %v926 = vor.u32 1.1754944e-38, %v925
        %v927 = vsel %vm924, %v926, %v922
        %v928 = vmul.f32 %v910, %v927
        %v929 = vpack.c.bf16 %v928, %v928
        %s930 = scalar_lea.vmem %s670, 4 [#allocation20]
        %931 = vst.msk [vmem:[%s930] sm:$0xf] %vm851, %v929
        %v933 = vunpack.c.l.b16 %v798
        %v934 = vpack.c.b16 %v933, %v933
        %935 = vrot.lane.b32.xlu0 %v934, 120
        %v936 = vpop.permute.xlu0 %935
        %v938 = vsel %vm801, %v929, 0
        %v941 = vsel %vm856, %v936, 0
        %943 = vmatpush.bf16.msra.mxu0 0
        %944 = vmatpush.bf16.msra.mxu0 0
        %945 = vmatpush.bf16.msra.mxu0 0
        %946 = vmatpush.bf16.msra.mxu0 0
        %947 = vmatpush.bf16.msra.mxu0 0
        %948 = vmatpush.bf16.msra.mxu0 0
        %949 = vmatpush.bf16.msra.mxu0 0
        %950 = vmatpush.bf16.msra.mxu0 %v941
        %951 = vmatmul.bf16.gmra.mxu0 %v938
        %v952 = vpop.f32.mrf.mxu0
        %v953 = vadd.f32 0.0, %v952
        %v954 = vpop.f32.mrf.mxu0
        %955 = vdwg.mxu0
        %957 = vrot.lane.b32.xlu0 %v953, 8
        %v958 = vpop.permute.xlu0 %957
        %vm960 = vcmask 130112
        %961 = vst.msk [vmem:[#allocation4] sm:$0xff] %vm960, %v958
        %962 = vrot.lane.b32.xlu0 %v876, 112
        %v963 = vpop.permute.xlu0 %962
        %964 = vrot.lane.b32.xlu0 %v881, 112
        %v965 = vpop.permute.xlu0 %964
        %v967 = vsel %vm801, %v963, 0
        %v970 = vsel %vm801, %v965, 0
        %972 = vmatpush.bf16.xpose.msra.mxu0 0
        %973 = vmatpush.bf16.xpose.msra.mxu0 0
        %974 = vmatpush.bf16.xpose.msra.mxu0 0
        %975 = vmatpush.bf16.xpose.msra.mxu0 0
        %976 = vmatpush.bf16.xpose.msra.mxu0 0
        %977 = vmatpush.bf16.xpose.msra.mxu0 0
        %978 = vmatpush.bf16.xpose.msra.mxu0 0
        %979 = vmatpush.bf16.xpose.msra.mxu0 %v970
        %980 = vmatmul.bf16.gmra.mxu0 %v967
        %v981 = vpop.f32.mrf.mxu0
        %v982 = vadd.f32 0.0, %v981
        %v983 = vpop.f32.mrf.mxu0
        %984 = vdwg.mxu0
        %v985 = vmul.f32 %v982, 0.35355338
        %v986 = vsel %vm824, -1e+09, %v985
        %v987 = vsel %vm801, %v986, -inf
        %988 = vmax.xlane.f32.xlu0 %v987
        %v989 = vpop.xlane.xlu0 %988
        %v990 = vsub.f32 %v986, %v989
        %v991 = vmul.f32 %v990, 1.442695
        %v992 = vpow.pop %v991
        %v993 = vsel %vm801, %v992, 0.0
        %994 = vadd.xlane.f32.xlu0 %v993
        %v995 = vpop.xlane.xlu0 %994
        %v996 = vrcp.pop %v995
        %v997 = vmul.f32 %v995, %v996
        %v998 = vsub.f32 1.0, %v997
        %v999 = vmul.f32 %v996, %v998
        %v1000 = vadd.f32 %v996, %v999
        %vm1001 = vweird.f32 %v995
        %vm1002 = vweird.f32 %v996
        %vm1003 = vmor %vm1001, %vm1002
        %v1004 = vsel %vm1003, %v996, %v1000
        %v1005 = vand.u32 2147483647, %v995
        %vm1006 = vcmp.eq.f32.partialorder %v1005, 8.507059e+37
        %v1007 = vand.u32 %v995, 2147483648
        %v1008 = vor.u32 1.1754944e-38, %v1007
        %v1009 = vsel %vm1006, %v1008, %v1004
        %v1010 = vmul.f32 %v992, %v1009
        %v1011 = vpack.c.bf16 %v1010, %v1010
        %s1012 = scalar_lea.vmem %s670, 8 [#allocation20]
        %1013 = vst.msk [vmem:[%s1012] sm:$0xf] %vm851, %v1011
        %1014 = vrot.lane.b32.xlu0 %v934, 112
        %v1015 = vpop.permute.xlu0 %1014
        %v1017 = vsel %vm801, %v1011, 0
        %v1020 = vsel %vm856, %v1015, 0
        %1022 = vmatpush.bf16.msra.mxu0 0
        %1023 = vmatpush.bf16.msra.mxu0 0
        %1024 = vmatpush.bf16.msra.mxu0 0
        %1025 = vmatpush.bf16.msra.mxu0 0
        %1026 = vmatpush.bf16.msra.mxu0 0
        %1027 = vmatpush.bf16.msra.mxu0 0
        %1028 = vmatpush.bf16.msra.mxu0 0
        %1029 = vmatpush.bf16.msra.mxu0 %v1020
        %1030 = vmatmul.bf16.gmra.mxu0 %v1017
        %v1031 = vpop.f32.mrf.mxu0
        %v1032 = vadd.f32 0.0, %v1031
        %v1033 = vpop.f32.mrf.mxu0
        %1034 = vdwg.mxu0
        %1036 = vrot.lane.b32.xlu0 %v1032, 16
        %v1037 = vpop.permute.xlu0 %1036
        %vm1039 = vcmask 195712
        %1040 = vst.msk [vmem:[#allocation4] sm:$0xff] %vm1039, %v1037
        %1041 = vrot.lane.b32.xlu0 %v876, 104
        %v1042 = vpop.permute.xlu0 %1041
        %1043 = vrot.lane.b32.xlu0 %v881, 104
        %v1044 = vpop.permute.xlu0 %1043
        %v1046 = vsel %vm801, %v1042, 0
        %v1049 = vsel %vm801, %v1044, 0
        %1051 = vmatpush.bf16.xpose.msra.mxu0 0
        %1052 = vmatpush.bf16.xpose.msra.mxu0 0
        %1053 = vmatpush.bf16.xpose.msra.mxu0 0
        %1054 = vmatpush.bf16.xpose.msra.mxu0 0
        %1055 = vmatpush.bf16.xpose.msra.mxu0 0
        %1056 = vmatpush.bf16.xpose.msra.mxu0 0
        %1057 = vmatpush.bf16.xpose.msra.mxu0 0
        %1058 = vmatpush.bf16.xpose.msra.mxu0 %v1049
        %1059 = vmatmul.bf16.gmra.mxu0 %v1046
        %v1060 = vpop.f32.mrf.mxu0
        %v1061 = vadd.f32 0.0, %v1060
        %v1062 = vpop.f32.mrf.mxu0
        %1063 = vdwg.mxu0
        %v1064 = vmul.f32 %v1061, 0.35355338
        %v1065 = vsel %vm824, -1e+09, %v1064
        %v1066 = vsel %vm801, %v1065, -inf
        %1067 = vmax.xlane.f32.xlu0 %v1066
        %v1068 = vpop.xlane.xlu0 %1067
        %v1069 = vsub.f32 %v1065, %v1068
        %v1070 = vmul.f32 %v1069, 1.442695
        %v1071 = vpow.pop %v1070
        %v1072 = vsel %vm801, %v1071, 0.0
        %1073 = vadd.xlane.f32.xlu0 %v1072
        %v1074 = vpop.xlane.xlu0 %1073
        %v1075 = vrcp.pop %v1074
        %v1076 = vmul.f32 %v1074, %v1075
        %v1077 = vsub.f32 1.0, %v1076
        %v1078 = vmul.f32 %v1075, %v1077
        %v1079 = vadd.f32 %v1075, %v1078
        %vm1080 = vweird.f32 %v1074
        %vm1081 = vweird.f32 %v1075
        %vm1082 = vmor %vm1080, %vm1081
        %v1083 = vsel %vm1082, %v1075, %v1079
        %v1084 = vand.u32 2147483647, %v1074
        %vm1085 = vcmp.eq.f32.partialorder %v1084, 8.507059e+37
        %v1086 = vand.u32 %v1074, 2147483648
        %v1087 = vor.u32 1.1754944e-38, %v1086
        %v1088 = vsel %vm1085, %v1087, %v1083
        %v1089 = vmul.f32 %v1071, %v1088
        %v1090 = vpack.c.bf16 %v1089, %v1089
        %s1091 = scalar_lea.vmem %s670, 12 [#allocation20]
        %1092 = vst.msk [vmem:[%s1091] sm:$0xf] %vm851, %v1090
        %1093 = vrot.lane.b32.xlu0 %v934, 104
        %v1094 = vpop.permute.xlu0 %1093
        %v1096 = vsel %vm801, %v1090, 0
        %v1099 = vsel %vm856, %v1094, 0
        %1101 = vmatpush.bf16.msra.mxu0 0
        %1102 = vmatpush.bf16.msra.mxu0 0
        %1103 = vmatpush.bf16.msra.mxu0 0
        %1104 = vmatpush.bf16.msra.mxu0 0
        %1105 = vmatpush.bf16.msra.mxu0 0
        %1106 = vmatpush.bf16.msra.mxu0 0
        %1107 = vmatpush.bf16.msra.mxu0 0
        %1108 = vmatpush.bf16.msra.mxu0 %v1099
        %1109 = vmatmul.bf16.gmra.mxu0 %v1096
        %v1110 = vpop.f32.mrf.mxu0
        %v1111 = vadd.f32 0.0, %v1110
        %v1112 = vpop.f32.mrf.mxu0
        %1113 = vdwg.mxu0
        %1115 = vrot.lane.b32.xlu0 %v1111, 24
        %v1116 = vpop.permute.xlu0 %1115
        %vm1118 = vcmask 261312
        %1119 = vst.msk [vmem:[#allocation4] sm:$0xff] %vm1118, %v1116
        %v1120 = vld [vmem:[#allocation4] sm:$0xff]
        %v1121 = vpack.c.bf16 %v1120, %v1120
        %v1122 = vld [vmem:[#allocation17] sm:$0xf]
        %v1123 = vld [vmem:[#allocation17 + $0x4] sm:$0xf]
        %v1124 = vld [vmem:[#allocation17 + $0x8] sm:$0xf]
        %v1125 = vld [vmem:[#allocation17 + $0xc] sm:$0xf]
        %v1126 = vld [vmem:[%s11] sm:$0x1]
        %v1128 = vperm.slane %v1126, 0
        %v1134 = vunpack.c.l.b16 %v1122
        %v1135 = vunpack.c.l.b16 %v1123
        %v1136 = vunpack.c.l.b16 %v1124
        %v1137 = vunpack.c.l.b16 %v1125
        %v1138 = vpack.c.b16 %v1135, %v1134
        %v1139 = vpack.c.b16 %v1137, %v1136
        %v1143 = vsel %vm779, %v1121, 0
        %1145 = vmatpush.bf16.msra.mxu0 0
        %1146 = vmatpush.bf16.msra.mxu0 0
        %1147 = vmatpush.bf16.msra.mxu0 0
        %1148 = vmatpush.bf16.msra.mxu0 0
        %1149 = vmatpush.bf16.msra.mxu0 0
        %1150 = vmatpush.bf16.msra.mxu0 0
        %1151 = vmatpush.bf16.msra.mxu0 %v1139
        %1152 = vmatpush.bf16.msra.mxu0 %v1138
        %1153 = vmatmul.bf16.gmra.mxu0 %v1143
        %v1154 = vpop.f32.mrf.mxu0
        %v1155 = vadd.f32 %v1128, %v1154
        %v1156 = vpop.f32.mrf.mxu0
        %1157 = vdwg.mxu0
        %1158 = vst.msk [vmem:[%s663] sm:$0xff] %vm779, %v1155
        %s1159 = sand.u32 %s340, 1
        %s1160 = scalar_lea.sflag [#allocation7], %s1159
        %s1161 = sand.u32 %s340, 1
        %s1162 = smul.addr %s1161, 8
        %s1163 = scalar_lea.vmem [#allocation19], %s1162
        %s1164 = sand.u32 %s368, 1
        %s1165 = scalar_lea.sflag [#allocation21], %s1164
        %s1166 = sand.u32 %s368, 1
        %s1167 = smul.addr %s1166, 16
        %s1168 = scalar_lea.vmem [#allocation20], %s1167
        // Predicated region
        $region105: #{tpu_custom_call.1} parent=67 // pred_check
          %p1169 = pneg %p350
        $region106: #{tpu_custom_call.1} parent=67 // pred_check_branch
          %1171 = sbr.rel (%p1169) target = $region108
        $region107: #{tpu_custom_call.1} parent=67 // pred_region
          %1173 = vsyncadd %s1160, 0
          %s1174 = sadd.s32 %s47, %s46
          %s1175 = smul.addr %s1174, 8
          %s1176 = scalar_lea.hbm %s12, %s1175
          %s1178 = sshll.u32 %s1163, 4
          %s1179 = int_to_ptr.vmem [resolvable:$true] %s1178
          %s1180 = sshll.u32 %s1176, 4
          %s1181 = int_to_ptr.hbm [resolvable:$true] %s1180
          %1183 = dma.vmem_to_hbm [thread:$0]  %s1179, 128, %s1181, %s1160
        $region108: #{tpu_custom_call.1} parent=67 // pred_fallthru
          _
        // Predicated region
        $region109: #{tpu_custom_call.1} parent=67 // pred_check
          %p1184 = pneg %p378
        $region110: #{tpu_custom_call.1} parent=67 // pred_check_branch
          %1186 = sbr.rel (%p1184) target = $region112
        $region111: #{tpu_custom_call.1} parent=67 // pred_region
          %1188 = vsyncadd %s1165, 0
          %s1189 = smul.addr %s46, 4
          %s1190 = sadd.s32 %s47, %s1189
          %s1191 = smul.addr %s1190, 4
          %s1192 = scalar_lea.hbm %s13, %s1191
          %s1193 = sshll.u32 %s1168, 4
          %s1194 = int_to_ptr.vmem [resolvable:$true] %s1193
          %s1195 = sshll.u32 %s1192, 4
          %s1196 = int_to_ptr.hbm [resolvable:$true] %s1195
          %1201 = dma.vmem_to_hbm [thread:$0]  %s1194, 256, %s1196, %s1165, 64, 64, 4
        $region112: #{tpu_custom_call.1} parent=67 // pred_fallthru
          _
      $region68: #{tpu_custom_call.1} parent=5 // pred_fallthru
        _
      %p1202 = scmp.le.s32.totalorder 2, %s37
      // Predicated region
      $region113: #{tpu_custom_call.1} parent=5 // pred_check
        %p1203 = pneg %p1202
      $region114: #{tpu_custom_call.1} parent=5 // pred_check_branch
        %1205 = sbr.rel (%p1203) target = $region116
      $region115: #{tpu_custom_call.1} parent=5 // pred_region
        %s1206 = ssub.s32 %s37, 2
        // Predicated region
        $region117: #{tpu_custom_call.1} parent=115 // pred_check
          %p1207 = pneg %p356
        $region118: #{tpu_custom_call.1} parent=115 // pred_check_branch
          %1209 = sbr.rel (%p1207) target = $region120
        $region119: #{tpu_custom_call.1} parent=115 // pred_region
          %s1210 = sand.u32 %s341, 1
          %s1211 = scalar_lea.sflag [#allocation7], %s1210
          %s1212 = sand.u32 %s341, 1
          %s1213 = smul.addr %s1212, 8
          %s1214 = scalar_lea.vmem [#allocation19], %s1213
          %1216 = dma.done %s1211, 128
        $region120: #{tpu_custom_call.1} parent=115 // pred_fallthru
          _
        // Predicated region
        $region121: #{tpu_custom_call.1} parent=115 // pred_check
          %p1217 = pneg %p384
        $region122: #{tpu_custom_call.1} parent=115 // pred_check_branch
          %1219 = sbr.rel (%p1217) target = $region124
        $region123: #{tpu_custom_call.1} parent=115 // pred_region
          %s1220 = sand.u32 %s369, 1
          %s1221 = scalar_lea.sflag [#allocation21], %s1220
          %s1222 = sand.u32 %s369, 1
          %s1223 = smul.addr %s1222, 16
          %s1224 = scalar_lea.vmem [#allocation20], %s1223
          %1226 = dma.done %s1221, 256
        $region124: #{tpu_custom_call.1} parent=115 // pred_fallthru
          _
      $region116: #{tpu_custom_call.1} parent=5 // pred_fallthru
        _
    $region6: #{tpu_custom_call.1} parent=1 // loop_footer
      %s41 = sadd.s32 1, %s37
    $region7: #{tpu_custom_call.1} parent=1 // loop_footer_branch
      %36 = sbr.rel target = $region3
    $region8: #{tpu_custom_call.1} parent=1 // loop_exit
      _
    %1227 = vsyncpa [#allocation6], 1
    %s1228 = scalar_lea.sflag [#allocation6], 1
    %1229 = vsyncpa %s1228, 1
    %1230 = vsyncpa [#allocation9], 1
    %s1231 = scalar_lea.sflag [#allocation9], 1
    %1232 = vsyncpa %s1231, 1
    %1233 = vsyncpa [#allocation12], 1
    %s1234 = scalar_lea.sflag [#allocation12], 1
    %1235 = vsyncpa %s1234, 1
    %1236 = vsyncpa [#allocation15], 1
    %1237 = vsyncpa [#allocation18], 1
    %1238 = vsyncpa [#allocation7], 1
    %s1239 = scalar_lea.sflag [#allocation7], 1
    %1240 = vsyncpa %s1239, 1
    %1241 = vsyncpa [#allocation21], 1
    %s1242 = scalar_lea.sflag [#allocation21], 1
    %1243 = vsyncpa %s1242, 1

</llo_original>
